<compile_context>
chip_gen: v5e
topology: v5e:2x2
jax: 0.10.0
libtpu: 0.0.40
codegen_flags: <defaults>
</compile_context>

<pallas_src>
import functools
import math

import jax
import jax.numpy as jnp
from jax.experimental import pallas as pl
from jax.experimental.pallas import tpu as pltpu


# --------------------------- tiling / compiler helpers -----------------------

_VMEM_LIMIT_BYTES = 32 * 1024 * 1024  # safe on v5e/v6e (128 MiB) and v7x (64 MiB)


def _mosaic(dims):
    return pltpu.CompilerParams(
        dimension_semantics=dims, vmem_limit_bytes=_VMEM_LIMIT_BYTES)


def _pick_tile(dim, target, base):
    """Largest tile <= target that divides `dim` and respects the (8,128) rule.

    A block equal to the full dimension is always legal, so small dims fall
    through untouched.
    """
    if dim <= target:
        return dim
    t = (target // base) * base
    while t >= base:
        if dim % t == 0:
            return t
        t -= base
    return dim


# ----------------------------- Pallas kernels --------------------------------

def _matmul_kernel(x_ref, w_ref, b_ref, o_ref, acc_ref, *, epilogue):
    """Tiled y = x @ w (+ b) with optional fused GELU / row-softmax epilogue."""
    k = pl.program_id(2)

    @pl.when(k == 0)
    def _init():
        acc_ref[...] = jnp.zeros_like(acc_ref)

    acc_ref[...] += jnp.dot(x_ref[...], w_ref[...],
                            preferred_element_type=jnp.float32)

    @pl.when(k == pl.num_programs(2) - 1)
    def _epilogue():
        y = acc_ref[...] + b_ref[...].astype(jnp.float32)  # bias only once
        if epilogue == "gelu":
            y = 0.5 * y * (1.0 + jax.lax.erf(y * (1.0 / math.sqrt(2.0))))
        elif epilogue == "softmax":
            # Whole row lives in this N tile (asserted in the wrapper).
            y = y - jnp.max(y, axis=-1, keepdims=True)
            e = jnp.exp(y)
            y = e / jnp.sum(e, axis=-1, keepdims=True)  # exact: rows sum to 1
        o_ref[...] = y.astype(o_ref.dtype)


def _matmul_res_ln_kernel(x_ref, w_ref, b_ref, r_ref, g_ref, bt_ref,
                          o_ref, acc_ref, *, eps):
    """Tiled y = LayerNorm(residual + x @ w + b); LN fused into writeback."""
    k = pl.program_id(1)

    @pl.when(k == 0)
    def _init():
        acc_ref[...] = jnp.zeros_like(acc_ref)

    acc_ref[...] += jnp.dot(x_ref[...], w_ref[...],
                            preferred_element_type=jnp.float32)

    @pl.when(k == pl.num_programs(1) - 1)
    def _epilogue():
        y = (acc_ref[...] + b_ref[...].astype(jnp.float32)
             + r_ref[...].astype(jnp.float32))
        mean = jnp.mean(y, axis=-1, keepdims=True)
        var = jnp.mean(jnp.square(y - mean), axis=-1, keepdims=True)  # biased
        y = (y - mean) * jax.lax.rsqrt(var + eps)
        o_ref[...] = (y * g_ref[...].astype(jnp.float32)
                      + bt_ref[...].astype(jnp.float32)).astype(o_ref.dtype)


def _res_ln_kernel(x_ref, r_ref, g_ref, b_ref, o_ref, *, eps):
    """LayerNorm(x + r), row-tiled (used for the embedding LN)."""
    y = x_ref[...].astype(jnp.float32) + r_ref[...].astype(jnp.float32)
    mean = jnp.mean(y, axis=-1, keepdims=True)
    var = jnp.mean(jnp.square(y - mean), axis=-1, keepdims=True)
    y = (y - mean) * jax.lax.rsqrt(var + eps)
    o_ref[...] = (y * g_ref[...].astype(jnp.float32)
                  + b_ref[...].astype(jnp.float32)).astype(o_ref.dtype)


def _attn_kernel(qkv_ref, o_ref, *, num_heads, head_dim, scale):
    """All heads of one batch element per grid step; lane-dense [S, D] output.

    Heads are sliced from the fused QKV tile inside the kernel, so no
    host-side split_heads/merge_heads transposes (and no sub-128-lane output
    blocks for the merged result).
    """
    # TODO(synk): for long sequences convert to a flash-style KV-tiled online
    # softmax; at these sizes the full SxS score matrix fits comfortably in VMEM.
    qkv = qkv_ref[0]                       # [S, 3D], bf16
    d_model = num_heads * head_dim
    outs = []
    for h in range(num_heads):
        lo = h * head_dim
        hi = lo + head_dim
        q = qkv[:, lo:hi]
        k = qkv[:, d_model + lo:d_model + hi]
        v = qkv[:, 2 * d_model + lo:2 * d_model + hi]
        s = jnp.dot(q, k.T, preferred_element_type=jnp.float32) * scale
        s = s - jnp.max(s, axis=-1, keepdims=True)
        p = jnp.exp(s)
        p = p * pl.reciprocal(jnp.sum(p, axis=-1, keepdims=True), approx=True)
        outs.append(jnp.dot(p.astype(qkv.dtype), v,
                            preferred_element_type=jnp.float32))
    o_ref[0] = jnp.concatenate(outs, axis=-1).astype(o_ref.dtype)


# ------------------------------ host wrappers --------------------------------

def linear(x, w, b, *, epilogue=None, out_dtype=None, tm=256, tn=256, tk=512):
    """y = x @ w + b with optional fused GELU / softmax epilogue (tiled)."""
    M, K = x.shape
    Kw, N = w.shape
    assert K == Kw
    out_dtype = out_dtype or x.dtype
    tm = _pick_tile(M, tm, 8)
    tn = _pick_tile(N, tn, 128)
    tk = _pick_tile(K, tk, 128)
    if epilogue == "softmax":
        # Softmax epilogue needs the whole row resident in one N tile.
        assert tn == N, "softmax epilogue requires a single N tile"
    grid = (M // tm, N // tn, K // tk)
    return pl.pallas_call(
        functools.partial(_matmul_kernel, epilogue=epilogue),
        out_shape=jax.ShapeDtypeStruct((M, N), out_dtype),
        grid=grid,
        in_specs=[
            pl.BlockSpec((tm, tk), lambda i, j, k: (i, k)),
            pl.BlockSpec((tk, tn), lambda i, j, k: (k, j)),
            pl.BlockSpec((1, tn), lambda i, j, k: (0, j)),
        ],
        out_specs=pl.BlockSpec((tm, tn), lambda i, j, k: (i, j)),
        scratch_shapes=[pltpu.VMEM((tm, tn), jnp.float32)],
        compiler_params=_mosaic(("parallel", "parallel", "arbitrary")),
    )(x, w, b)


def linear_residual_ln(x, w, b, residual, gamma, beta, *,
                       eps=1e-5, tm=256, tk=512):
    """y = LayerNorm(residual + x @ w + b), tiled over (rows, K)."""
    M, K = x.shape
    Kw, N = w.shape
    assert K == Kw and residual.shape == (M, N)
    tm = _pick_tile(M, tm, 8)
    tk = _pick_tile(K, tk, 128)
    grid = (M // tm, K // tk)
    return pl.pallas_call(
        functools.partial(_matmul_res_ln_kernel, eps=eps),
        out_shape=jax.ShapeDtypeStruct((M, N), residual.dtype),
        grid=grid,
        in_specs=[
            pl.BlockSpec((tm, tk), lambda i, k: (i, k)),
            pl.BlockSpec((tk, N), lambda i, k: (k, 0)),
            pl.BlockSpec((1, N), lambda i, k: (0, 0)),
            pl.BlockSpec((tm, N), lambda i, k: (i, 0)),
            pl.BlockSpec((1, N), lambda i, k: (0, 0)),
            pl.BlockSpec((1, N), lambda i, k: (0, 0)),
        ],
        out_specs=pl.BlockSpec((tm, N), lambda i, k: (i, 0)),
        scratch_shapes=[pltpu.VMEM((tm, N), jnp.float32)],
        compiler_params=_mosaic(("parallel", "arbitrary")),
    )(x, w, b, residual, gamma, beta)


def residual_layer_norm(x, r, gamma, beta, *, eps=1e-5, tm=512):
    """LayerNorm(x + r), row-tiled with a parallel grid."""
    M, D = x.shape
    tm = _pick_tile(M, tm, 8)
    grid = (M // tm,)
    return pl.pallas_call(
        functools.partial(_res_ln_kernel, eps=eps),
        out_shape=jax.ShapeDtypeStruct((M, D), x.dtype),
        grid=grid,
        in_specs=[
            pl.BlockSpec((tm, D), lambda i: (i, 0)),
            pl.BlockSpec((tm, D), lambda i: (i, 0)),
            pl.BlockSpec((1, D), lambda i: (0, 0)),
            pl.BlockSpec((1, D), lambda i: (0, 0)),
        ],
        out_specs=pl.BlockSpec((tm, D), lambda i: (i, 0)),
        compiler_params=_mosaic(("parallel",)),
    )(x, r, gamma, beta)


def mha(qkv, num_heads):
    """qkv: [B, S, 3*D] (fused projection output) -> [B, S, D]."""
    B, S, three_d = qkv.shape
    D = three_d // 3
    dh = D // num_heads
    return pl.pallas_call(
        functools.partial(_attn_kernel, num_heads=num_heads, head_dim=dh,
                          scale=1.0 / math.sqrt(dh)),
        out_shape=jax.ShapeDtypeStruct((B, S, D), qkv.dtype),
        grid=(B,),
        in_specs=[pl.BlockSpec((1, S, three_d), lambda b: (b, 0, 0))],
        out_specs=pl.BlockSpec((1, S, D), lambda b: (b, 0, 0)),
        compiler_params=_mosaic(("parallel",)),
    )(qkv)


# ------------------------------ parameters -----------------------------------

def init_params(key, embed_dim, num_heads, num_blocks, vocab_size, seq_len):
    D = embed_dim
    std = 0.02
    wdt = jnp.bfloat16  # bf16 weights for the MXU; f32 accumulation in-kernel

    def dense(k, fan_in, fan_out):
        return (jax.random.normal(k, (fan_in, fan_out), jnp.float32)
                * std).astype(wdt)

    keys = jax.random.split(key, 2 + num_blocks)
    params = {
        "tok_embed": (jax.random.normal(keys[0], (vocab_size, D), jnp.float32)
                      * std).astype(wdt),
        "pos_embed": jnp.zeros((1, seq_len, D), wdt),   # torch.zeros in __init__
        "ln_g": jnp.ones((1, D), jnp.float32),
        "ln_b": jnp.zeros((1, D), jnp.float32),
        "fc_w": dense(keys[1], D, vocab_size),
        "fc_b": jnp.zeros((1, vocab_size), jnp.float32),
        "blocks": [],
    }
    for li in range(num_blocks):
        bk = jax.random.split(keys[2 + li], 6)
        wq, wk, wv = dense(bk[0], D, D), dense(bk[1], D, D), dense(bk[2], D, D)
        blk = {
            # Fused QKV projection: one [D, 3D] matmul instead of three.
            "wqkv": jnp.concatenate([wq, wk, wv], axis=1),
            "bqkv": jnp.zeros((1, 3 * D), jnp.float32),
            "wo": dense(bk[3], D, D), "bo": jnp.zeros((1, D), jnp.float32),
            "w1": dense(bk[4], D, 4 * D), "b1": jnp.zeros((1, 4 * D), jnp.float32),
            "w2": dense(bk[5], 4 * D, D), "b2": jnp.zeros((1, D), jnp.float32),
            "ln1_g": jnp.ones((1, D), jnp.float32),
            "ln1_b": jnp.zeros((1, D), jnp.float32),
            "ln2_g": jnp.ones((1, D), jnp.float32),
            "ln2_b": jnp.zeros((1, D), jnp.float32),
        }
        params["blocks"].append(blk)
    return params


# ------------------------------ forward pass ----------------------------------

def bert_forward(params, token_ids, num_heads):
    B, S = token_ids.shape
    D = params["tok_embed"].shape[1]

    # Embedding gather (plain JAX glue) + positional embedding.
    tok = jnp.take(params["tok_embed"], token_ids, axis=0).reshape(B * S, D)
    pos = jnp.broadcast_to(params["pos_embed"][:, :S, :],
                           (B, S, D)).reshape(B * S, D)

    # x = ln(tok + pos): fused residual add + LayerNorm, row-tiled.
    x = residual_layer_norm(tok, pos, params["ln_g"], params["ln_b"])

    for blk in params["blocks"]:
        # --- attention sub-layer: x = ln1(x + proj(attn(x))) ---
        qkv = linear(x, blk["wqkv"], blk["bqkv"])            # [B*S, 3D] fused QKV
        attn = mha(qkv.reshape(B, S, 3 * D), num_heads)      # [B, S, D]
        # output projection fused with residual add + LayerNorm writeback
        x = linear_residual_ln(attn.reshape(B * S, D), blk["wo"], blk["bo"],
                               residual=x, gamma=blk["ln1_g"], beta=blk["ln1_b"])

        # --- feed-forward sub-layer: x = ln2(x + ff(x)) ---
        h = linear(x, blk["w1"], blk["b1"], epilogue="gelu")  # fused GELU
        x = linear_residual_ln(h, blk["w2"], blk["b2"],
                               residual=x, gamma=blk["ln2_g"], beta=blk["ln2_b"])

    # fc + softmax over vocab, fused into one tiled matmul (f32 output).
    probs = linear(x, params["fc_w"], params["fc_b"],
                   epilogue="softmax", out_dtype=jnp.float32)
    return probs.reshape(B, S, -1)


# ---------------------------------- main ---------------------------------------

if __name__ == "__main__":
    EMBED_DIM = 32
    NUM_HEADS = 4
    NUM_BLOCKS = 2
    VOCAB_SIZE = 64
    SEQ_LEN = 8
    BATCH = 2

    key = jax.random.PRNGKey(0)
    pkey, xkey = jax.random.split(key)

    params = init_params(pkey, EMBED_DIM, NUM_HEADS, NUM_BLOCKS,
                         VOCAB_SIZE, SEQ_LEN)
    token_ids = jax.random.randint(xkey, (BATCH, SEQ_LEN), 0, VOCAB_SIZE,
                                   dtype=jnp.int32)

    fwd = jax.jit(bert_forward, static_argnums=(2,))
    out = jax.block_until_ready(fwd(params, token_ids, NUM_HEADS))

    assert out.shape == (BATCH, SEQ_LEN, VOCAB_SIZE)
    assert out.dtype == jnp.float32
    assert bool(jnp.all(jnp.isfinite(out)))
    # softmax rows must sum to ~1 (exact division used in the fc epilogue)
    assert bool(jnp.allclose(jnp.sum(out, axis=-1), 1.0, atol=1e-4))

    print("KERNEL_OK")
</pallas_src>

<mosaic_0001>
module attributes {stable_mosaic.version = 11 : i64} {
  func.func @_res_ln_kernel(%arg0: i32, %arg1: memref<16x32xbf16, #tpu.memory_space<vmem>>, %arg2: memref<16x32xbf16, #tpu.memory_space<vmem>>, %arg3: memref<1x32xf32, #tpu.memory_space<vmem>>, %arg4: memref<1x32xf32, #tpu.memory_space<vmem>>, %arg5: memref<16x32xbf16, #tpu.memory_space<vmem>>) attributes {dimension_semantics = [#tpu.dimension_semantics<parallel>], iteration_bounds = array<i64: 1>, scalar_prefetch = 0 : i64, scratch_operands = 0 : i64, tpu.core_type = #tpu.core_type<tc>, window_params = [{transform_indices = @transform_0, window_bounds = array<i64: 16, 32>}, {transform_indices = @transform_1, window_bounds = array<i64: 16, 32>}, {pipeline_mode = #tpu.pipeline_mode<synchronous>, transform_indices = @transform_2, window_bounds = array<i64: 1, 32>}, {pipeline_mode = #tpu.pipeline_mode<synchronous>, transform_indices = @transform_3, window_bounds = array<i64: 1, 32>}, {transform_indices = @transform_4, window_bounds = array<i64: 16, 32>}]} {
    %c0 = arith.constant 0 : index
    %c0_0 = arith.constant 0 : index
    %0 = vector.load %arg1[%c0, %c0_0] : memref<16x32xbf16, #tpu.memory_space<vmem>>, vector<16x32xbf16>
    %1 = arith.extf %0 : vector<16x32xbf16> to vector<16x32xf32>
    %c0_1 = arith.constant 0 : index
    %c0_2 = arith.constant 0 : index
    %2 = vector.load %arg2[%c0_1, %c0_2] : memref<16x32xbf16, #tpu.memory_space<vmem>>, vector<16x32xbf16>
    %3 = arith.extf %2 : vector<16x32xbf16> to vector<16x32xf32>
    %4 = arith.addf %1, %3 : vector<16x32xf32>
    %cst = arith.constant dense<0.000000e+00> : vector<16xf32>
    %5 = vector.multi_reduction <add>, %4, %cst [1] : vector<16x32xf32> to vector<16xf32>
    %6 = vector.shape_cast %5 : vector<16xf32> to vector<16x1xf32>
    %cst_3 = arith.constant 3.200000e+01 : f32
    %7 = vector.broadcast %cst_3 : f32 to vector<16x1xf32>
    %8 = arith.divf %6, %7 : vector<16x1xf32>
    %9 = vector.broadcast %8 : vector<16x1xf32> to vector<16x32xf32>
    %10 = arith.subf %4, %9 : vector<16x32xf32>
    %11 = arith.mulf %10, %10 : vector<16x32xf32>
    %cst_4 = arith.constant dense<0.000000e+00> : vector<16xf32>
    %12 = vector.multi_reduction <add>, %11, %cst_4 [1] : vector<16x32xf32> to vector<16xf32>
    %13 = vector.shape_cast %12 : vector<16xf32> to vector<16x1xf32>
    %cst_5 = arith.constant 3.200000e+01 : f32
    %14 = vector.broadcast %cst_5 : f32 to vector<16x1xf32>
    %15 = arith.divf %13, %14 : vector<16x1xf32>
    %16 = vector.broadcast %8 : vector<16x1xf32> to vector<16x32xf32>
    %17 = arith.subf %4, %16 : vector<16x32xf32>
    %cst_6 = arith.constant 9.99999974E-6 : f32
    %18 = vector.broadcast %cst_6 : f32 to vector<16x1xf32>
    %19 = arith.addf %15, %18 : vector<16x1xf32>
    %20 = math.rsqrt %19 : vector<16x1xf32>
    %21 = vector.broadcast %20 : vector<16x1xf32> to vector<16x32xf32>
    %22 = arith.mulf %17, %21 : vector<16x32xf32>
    %c0_7 = arith.constant 0 : index
    %c0_8 = arith.constant 0 : index
    %23 = vector.load %arg3[%c0_7, %c0_8] : memref<1x32xf32, #tpu.memory_space<vmem>>, vector<1x32xf32>
    %24 = vector.broadcast %23 : vector<1x32xf32> to vector<16x32xf32>
    %25 = arith.mulf %22, %24 : vector<16x32xf32>
    %c0_9 = arith.constant 0 : index
    %c0_10 = arith.constant 0 : index
    %26 = vector.load %arg4[%c0_9, %c0_10] : memref<1x32xf32, #tpu.memory_space<vmem>>, vector<1x32xf32>
    %27 = vector.broadcast %26 : vector<1x32xf32> to vector<16x32xf32>
    %28 = arith.addf %25, %27 : vector<16x32xf32>
    %29 = arith.truncf %28 : vector<16x32xf32> to vector<16x32xbf16>
    %c0_11 = arith.constant 0 : index
    %c0_12 = arith.constant 0 : index
    %30 = vector.load %arg5[%c0_11, %c0_12] : memref<16x32xbf16, #tpu.memory_space<vmem>>, vector<16x32xbf16>
    tpu.vector_store %arg5[%c0_11, %c0_12], %29 {strides = array<i32>} : memref<16x32xbf16, #tpu.memory_space<vmem>>, vector<16x32xbf16>,
    return
  }
  func.func @transform_0(%arg0: i32) -> (i32, i32) {
    %c0_i32 = arith.constant 0 : i32
    %c0_i32_0 = arith.constant 0 : i32
    return %arg0, %c0_i32 : i32, i32
  }
  func.func @transform_1(%arg0: i32) -> (i32, i32) {
    %c0_i32 = arith.constant 0 : i32
    %c0_i32_0 = arith.constant 0 : i32
    return %arg0, %c0_i32 : i32, i32
  }
  func.func @transform_2(%arg0: i32) -> (i32, i32) {
    %c0_i32 = arith.constant 0 : i32
    %c0_i32_0 = arith.constant 0 : i32
    %c0_i32_1 = arith.constant 0 : i32
    return %c0_i32, %c0_i32_0 : i32, i32
  }
  func.func @transform_3(%arg0: i32) -> (i32, i32) {
    %c0_i32 = arith.constant 0 : i32
    %c0_i32_0 = arith.constant 0 : i32
    %c0_i32_1 = arith.constant 0 : i32
    return %c0_i32, %c0_i32_0 : i32, i32
  }
  func.func @transform_4(%arg0: i32) -> (i32, i32) {
    %c0_i32 = arith.constant 0 : i32
    %c0_i32_0 = arith.constant 0 : i32
    return %arg0, %c0_i32 : i32, i32
  }
}

module attributes {stable_mosaic.version = 11 : i64} {
  func.func @_matmul_res_ln_kernel(%arg0: i32, %arg1: i32, %arg2: memref<16x32xbf16, #tpu.memory_space<vmem>>, %arg3: memref<32x32xbf16, #tpu.memory_space<vmem>>, %arg4: memref<1x32xf32, #tpu.memory_space<vmem>>, %arg5: memref<16x32xbf16, #tpu.memory_space<vmem>>, %arg6: memref<1x32xf32, #tpu.memory_space<vmem>>, %arg7: memref<1x32xf32, #tpu.memory_space<vmem>>, %arg8: memref<16x32xbf16, #tpu.memory_space<vmem>>, %arg9: memref<16x32xf32, #tpu.memory_space<vmem>>) attributes {dimension_semantics = [#tpu.dimension_semantics<parallel>, #tpu.dimension_semantics<arbitrary>], iteration_bounds = array<i64: 1, 1>, scalar_prefetch = 0 : i64, scratch_operands = 1 : i64, tpu.core_type = #tpu.core_type<tc>, window_params = [{transform_indices = @transform_0, window_bounds = array<i64: 16, 32>}, {transform_indices = @transform_1, window_bounds = array<i64: 32, 32>}, {pipeline_mode = #tpu.pipeline_mode<synchronous>, transform_indices = @transform_2, window_bounds = array<i64: 1, 32>}, {transform_indices = @transform_3, window_bounds = array<i64: 16, 32>}, {pipeline_mode = #tpu.pipeline_mode<synchronous>, transform_indices = @transform_4, window_bounds = array<i64: 1, 32>}, {pipeline_mode = #tpu.pipeline_mode<synchronous>, transform_indices = @transform_5, window_bounds = array<i64: 1, 32>}, {transform_indices = @transform_6, window_bounds = array<i64: 16, 32>}]} {
    %c0_i32 = arith.constant 0 : i32
    %0 = arith.cmpi eq, %arg1, %c0_i32 : i32
    %1 = arith.extui %0 : i1 to i32
    %c0_i32_0 = arith.constant 0 : i32
    %2 = arith.cmpi ne, %1, %c0_i32_0 : i32
    scf.if %2 {
      %cst_10 = arith.constant 0.000000e+00 : f32
      %12 = vector.broadcast %cst_10 : f32 to vector<16x32xf32>
      %c0_11 = arith.constant 0 : index
      %c0_12 = arith.constant 0 : index
      %13 = vector.load %arg9[%c0_11, %c0_12] : memref<16x32xf32, #tpu.memory_space<vmem>>, vector<16x32xf32>
      tpu.vector_store %arg9[%c0_11, %c0_12], %12 {strides = array<i32>} : memref<16x32xf32, #tpu.memory_space<vmem>>, vector<16x32xf32>,
    } else {
    }
    %c0 = arith.constant 0 : index
    %c0_1 = arith.constant 0 : index
    %3 = vector.load %arg9[%c0, %c0_1] : memref<16x32xf32, #tpu.memory_space<vmem>>, vector<16x32xf32>
    %c0_2 = arith.constant 0 : index
    %c0_3 = arith.constant 0 : index
    %4 = vector.load %arg2[%c0_2, %c0_3] : memref<16x32xbf16, #tpu.memory_space<vmem>>, vector<16x32xbf16>
    %c0_4 = arith.constant 0 : index
    %c0_5 = arith.constant 0 : index
    %5 = vector.load %arg3[%c0_4, %c0_5] : memref<32x32xbf16, #tpu.memory_space<vmem>>, vector<32x32xbf16>
    %cst = arith.constant dense<0.000000e+00> : vector<16x32xf32>
    %6 = tpu.matmul %4, %5, %cst {dimension_numbers = #tpu.dot_dimension_numbers<[1], [0], [0], [1], [0, 0, 1, 1], [], []>} : vector<16x32xbf16>, vector<32x32xbf16>, vector<16x32xf32> -> vector<16x32xf32>
    %7 = arith.addf %3, %6 : vector<16x32xf32>
    %c0_6 = arith.constant 0 : index
    %c0_7 = arith.constant 0 : index
    %8 = vector.load %arg9[%c0_6, %c0_7] : memref<16x32xf32, #tpu.memory_space<vmem>>, vector<16x32xf32>
    tpu.vector_store %arg9[%c0_6, %c0_7], %7 {strides = array<i32>} : memref<16x32xf32, #tpu.memory_space<vmem>>, vector<16x32xf32>,
    %c0_i32_8 = arith.constant 0 : i32
    %9 = arith.cmpi eq, %arg1, %c0_i32_8 : i32
    %10 = arith.extui %9 : i1 to i32
    %c0_i32_9 = arith.constant 0 : i32
    %11 = arith.cmpi ne, %10, %c0_i32_9 : i32
    scf.if %11 {
      %c0_10 = arith.constant 0 : index
      %c0_11 = arith.constant 0 : index
      %12 = vector.load %arg9[%c0_10, %c0_11] : memref<16x32xf32, #tpu.memory_space<vmem>>, vector<16x32xf32>
      %c0_12 = arith.constant 0 : index
      %c0_13 = arith.constant 0 : index
      %13 = vector.load %arg4[%c0_12, %c0_13] : memref<1x32xf32, #tpu.memory_space<vmem>>, vector<1x32xf32>
      %14 = vector.broadcast %13 : vector<1x32xf32> to vector<16x32xf32>
      %15 = arith.addf %12, %14 : vector<16x32xf32>
      %c0_14 = arith.constant 0 : index
      %c0_15 = arith.constant 0 : index
      %16 = vector.load %arg5[%c0_14, %c0_15] : memref<16x32xbf16, #tpu.memory_space<vmem>>, vector<16x32xbf16>
      %17 = arith.extf %16 : vector<16x32xbf16> to vector<16x32xf32>
      %18 = arith.addf %15, %17 : vector<16x32xf32>
      %cst_16 = arith.constant dense<0.000000e+00> : vector<16xf32>
      %19 = vector.multi_reduction <add>, %18, %cst_16 [1] : vector<16x32xf32> to vector<16xf32>
      %20 = vector.shape_cast %19 : vector<16xf32> to vector<16x1xf32>
      %cst_17 = arith.constant 3.200000e+01 : f32
      %21 = vector.broadcast %cst_17 : f32 to vector<16x1xf32>
      %22 = arith.divf %20, %21 : vector<16x1xf32>
      %23 = vector.broadcast %22 : vector<16x1xf32> to vector<16x32xf32>
      %24 = arith.subf %18, %23 : vector<16x32xf32>
      %25 = arith.mulf %24, %24 : vector<16x32xf32>
      %cst_18 = arith.constant dense<0.000000e+00> : vector<16xf32>
      %26 = vector.multi_reduction <add>, %25, %cst_18 [1] : vector<16x32xf32> to vector<16xf32>
      %27 = vector.shape_cast %26 : vector<16xf32> to vector<16x1xf32>
      %cst_19 = arith.constant 3.200000e+01 : f32
      %28 = vector.broadcast %cst_19 : f32 to vector<16x1xf32>
      %29 = arith.divf %27, %28 : vector<16x1xf32>
      %30 = vector.broadcast %22 : vector<16x1xf32> to vector<16x32xf32>
      %31 = arith.subf %18, %30 : vector<16x32xf32>
      %cst_20 = arith.constant 9.99999974E-6 : f32
      %32 = vector.broadcast %cst_20 : f32 to vector<16x1xf32>
      %33 = arith.addf %29, %32 : vector<16x1xf32>
      %34 = math.rsqrt %33 : vector<16x1xf32>
      %35 = vector.broadcast %34 : vector<16x1xf32> to vector<16x32xf32>
      %36 = arith.mulf %31, %35 : vector<16x32xf32>
      %c0_21 = arith.constant 0 : index
      %c0_22 = arith.constant 0 : index
      %37 = vector.load %arg6[%c0_21, %c0_22] : memref<1x32xf32, #tpu.memory_space<vmem>>, vector<1x32xf32>
      %38 = vector.broadcast %37 : vector<1x32xf32> to vector<16x32xf32>
      %39 = arith.mulf %36, %38 : vector<16x32xf32>
      %c0_23 = arith.constant 0 : index
      %c0_24 = arith.constant 0 : index
      %40 = vector.load %arg7[%c0_23, %c0_24] : memref<1x32xf32, #tpu.memory_space<vmem>>, vector<1x32xf32>
      %41 = vector.broadcast %40 : vector<1x32xf32> to vector<16x32xf32>
      %42 = arith.addf %39, %41 : vector<16x32xf32>
      %43 = arith.truncf %42 : vector<16x32xf32> to vector<16x32xbf16>
      %c0_25 = arith.constant 0 : index
      %c0_26 = arith.constant 0 : index
      %44 = vector.load %arg8[%c0_25, %c0_26] : memref<16x32xbf16, #tpu.memory_space<vmem>>, vector<16x32xbf16>
      tpu.vector_store %arg8[%c0_25, %c0_26], %43 {strides = array<i32>} : memref<16x32xbf16, #tpu.memory_space<vmem>>, vector<16x32xbf16>,
    } else {
    }
    return
  }
  func.func @transform_0(%arg0: i32, %arg1: i32) -> (i32, i32) {
    %c0_i32 = arith.constant 0 : i32
    return %arg0, %arg1 : i32, i32
  }
  func.func @transform_1(%arg0: i32, %arg1: i32) -> (i32, i32) {
    %c0_i32 = arith.constant 0 : i32
    %c0_i32_0 = arith.constant 0 : i32
    return %arg1, %c0_i32 : i32, i32
  }
  func.func @transform_2(%arg0: i32, %arg1: i32) -> (i32, i32) {
    %c0_i32 = arith.constant 0 : i32
    %c0_i32_0 = arith.constant 0 : i32
    %c0_i32_1 = arith.constant 0 : i32
    return %c0_i32, %c0_i32_0 : i32, i32
  }
  func.func @transform_3(%arg0: i32, %arg1: i32) -> (i32, i32) {
    %c0_i32 = arith.constant 0 : i32
    %c0_i32_0 = arith.constant 0 : i32
    return %arg0, %c0_i32 : i32, i32
  }
  func.func @transform_4(%arg0: i32, %arg1: i32) -> (i32, i32) {
    %c0_i32 = arith.constant 0 : i32
    %c0_i32_0 = arith.constant 0 : i32
    %c0_i32_1 = arith.constant 0 : i32
    return %c0_i32, %c0_i32_0 : i32, i32
  }
  func.func @transform_5(%arg0: i32, %arg1: i32) -> (i32, i32) {
    %c0_i32 = arith.constant 0 : i32
    %c0_i32_0 = arith.constant 0 : i32
    %c0_i32_1 = arith.constant 0 : i32
    return %c0_i32, %c0_i32_0 : i32, i32
  }
  func.func @transform_6(%arg0: i32, %arg1: i32) -> (i32, i32) {
    %c0_i32 = arith.constant 0 : i32
    %c0_i32_0 = arith.constant 0 : i32
    return %arg0, %c0_i32 : i32, i32
  }
}

module attributes {stable_mosaic.version = 11 : i64} {
  func.func @_matmul_kernel(%arg0: i32, %arg1: i32, %arg2: i32, %arg3: memref<16x32xbf16, #tpu.memory_space<vmem>>, %arg4: memref<32x96xbf16, #tpu.memory_space<vmem>>, %arg5: memref<1x96xf32, #tpu.memory_space<vmem>>, %arg6: memref<16x96xbf16, #tpu.memory_space<vmem>>, %arg7: memref<16x96xf32, #tpu.memory_space<vmem>>) attributes {dimension_semantics = [#tpu.dimension_semantics<parallel>, #tpu.dimension_semantics<parallel>, #tpu.dimension_semantics<arbitrary>], iteration_bounds = array<i64: 1, 1, 1>, scalar_prefetch = 0 : i64, scratch_operands = 1 : i64, tpu.core_type = #tpu.core_type<tc>, window_params = [{transform_indices = @transform_0, window_bounds = array<i64: 16, 32>}, {transform_indices = @transform_1, window_bounds = array<i64: 32, 96>}, {transform_indices = @transform_2, window_bounds = array<i64: 1, 96>}, {transform_indices = @transform_3, window_bounds = array<i64: 16, 96>}]} {
    %c0_i32 = arith.constant 0 : i32
    %0 = arith.cmpi eq, %arg2, %c0_i32 : i32
    %1 = arith.extui %0 : i1 to i32
    %c0_i32_0 = arith.constant 0 : i32
    %2 = arith.cmpi ne, %1, %c0_i32_0 : i32
    scf.if %2 {
      %cst_10 = arith.constant 0.000000e+00 : f32
      %12 = vector.broadcast %cst_10 : f32 to vector<16x96xf32>
      %c0_11 = arith.constant 0 : index
      %c0_12 = arith.constant 0 : index
      %13 = vector.load %arg7[%c0_11, %c0_12] : memref<16x96xf32, #tpu.memory_space<vmem>>, vector<16x96xf32>
      tpu.vector_store %arg7[%c0_11, %c0_12], %12 {strides = array<i32>} : memref<16x96xf32, #tpu.memory_space<vmem>>, vector<16x96xf32>,
    } else {
    }
    %c0 = arith.constant 0 : index
    %c0_1 = arith.constant 0 : index
    %3 = vector.load %arg7[%c0, %c0_1] : memref<16x96xf32, #tpu.memory_space<vmem>>, vector<16x96xf32>
    %c0_2 = arith.constant 0 : index
    %c0_3 = arith.constant 0 : index
    %4 = vector.load %arg3[%c0_2, %c0_3] : memref<16x32xbf16, #tpu.memory_space<vmem>>, vector<16x32xbf16>
    %c0_4 = arith.constant 0 : index
    %c0_5 = arith.constant 0 : index
    %5 = vector.load %arg4[%c0_4, %c0_5] : memref<32x96xbf16, #tpu.memory_space<vmem>>, vector<32x96xbf16>
    %cst = arith.constant dense<0.000000e+00> : vector<16x96xf32>
    %6 = tpu.matmul %4, %5, %cst {dimension_numbers = #tpu.dot_dimension_numbers<[1], [0], [0], [1], [0, 0, 1, 1], [], []>} : vector<16x32xbf16>, vector<32x96xbf16>, vector<16x96xf32> -> vector<16x96xf32>
    %7 = arith.addf %3, %6 : vector<16x96xf32>
    %c0_6 = arith.constant 0 : index
    %c0_7 = arith.constant 0 : index
    %8 = vector.load %arg7[%c0_6, %c0_7] : memref<16x96xf32, #tpu.memory_space<vmem>>, vector<16x96xf32>
    tpu.vector_store %arg7[%c0_6, %c0_7], %7 {strides = array<i32>} : memref<16x96xf32, #tpu.memory_space<vmem>>, vector<16x96xf32>,
    %c0_i32_8 = arith.constant 0 : i32
    %9 = arith.cmpi eq, %arg2, %c0_i32_8 : i32
    %10 = arith.extui %9 : i1 to i32
    %c0_i32_9 = arith.constant 0 : i32
    %11 = arith.cmpi ne, %10, %c0_i32_9 : i32
    scf.if %11 {
      %c0_10 = arith.constant 0 : index
      %c0_11 = arith.constant 0 : index
      %12 = vector.load %arg7[%c0_10, %c0_11] : memref<16x96xf32, #tpu.memory_space<vmem>>, vector<16x96xf32>
      %c0_12 = arith.constant 0 : index
      %c0_13 = arith.constant 0 : index
      %13 = vector.load %arg5[%c0_12, %c0_13] : memref<1x96xf32, #tpu.memory_space<vmem>>, vector<1x96xf32>
      %14 = vector.broadcast %13 : vector<1x96xf32> to vector<16x96xf32>
      %15 = arith.addf %12, %14 : vector<16x96xf32>
      %16 = arith.truncf %15 : vector<16x96xf32> to vector<16x96xbf16>
      %c0_14 = arith.constant 0 : index
      %c0_15 = arith.constant 0 : index
      %17 = vector.load %arg6[%c0_14, %c0_15] : memref<16x96xbf16, #tpu.memory_space<vmem>>, vector<16x96xbf16>
      tpu.vector_store %arg6[%c0_14, %c0_15], %16 {strides = array<i32>} : memref<16x96xbf16, #tpu.memory_space<vmem>>, vector<16x96xbf16>,
    } else {
    }
    return
  }
  func.func @transform_0(%arg0: i32, %arg1: i32, %arg2: i32) -> (i32, i32) {
    %c0_i32 = arith.constant 0 : i32
    return %arg0, %arg2 : i32, i32
  }
  func.func @transform_1(%arg0: i32, %arg1: i32, %arg2: i32) -> (i32, i32) {
    %c0_i32 = arith.constant 0 : i32
    return %arg2, %arg1 : i32, i32
  }
  func.func @transform_2(%arg0: i32, %arg1: i32, %arg2: i32) -> (i32, i32) {
    %c0_i32 = arith.constant 0 : i32
    %c0_i32_0 = arith.constant 0 : i32
    return %c0_i32, %arg1 : i32, i32
  }
  func.func @transform_3(%arg0: i32, %arg1: i32, %arg2: i32) -> (i32, i32) {
    %c0_i32 = arith.constant 0 : i32
    return %arg0, %arg1 : i32, i32
  }
}

module attributes {stable_mosaic.version = 11 : i64} {
  func.func @_attn_kernel(%arg0: i32, %arg1: memref<1x8x96xbf16, #tpu.memory_space<vmem>>, %arg2: memref<1x8x32xbf16, #tpu.memory_space<vmem>>) attributes {dimension_semantics = [#tpu.dimension_semantics<parallel>], iteration_bounds = array<i64: 2>, scalar_prefetch = 0 : i64, scratch_operands = 0 : i64, tpu.core_type = #tpu.core_type<tc>, window_params = [{transform_indices = @transform_0, window_bounds = array<i64: 1, 8, 96>}, {transform_indices = @transform_1, window_bounds = array<i64: 1, 8, 32>}]} {
    %c0 = arith.constant 0 : index
    %c0_0 = arith.constant 0 : index
    %c0_1 = arith.constant 0 : index
    %0 = vector.load %arg1[%c0, %c0_0, %c0_1] : memref<1x8x96xbf16, #tpu.memory_space<vmem>>, vector<1x8x96xbf16>
    %1 = vector.shape_cast %0 : vector<1x8x96xbf16> to vector<8x96xbf16>
    %2 = vector.extract_strided_slice %1 {offsets = [0, 0], sizes = [8, 8], strides = [1, 1]} : vector<8x96xbf16> to vector<8x8xbf16>
    %3 = vector.extract_strided_slice %1 {offsets = [0, 32], sizes = [8, 8], strides = [1, 1]} : vector<8x96xbf16> to vector<8x8xbf16>
    %4 = vector.extract_strided_slice %1 {offsets = [0, 64], sizes = [8, 8], strides = [1, 1]} : vector<8x96xbf16> to vector<8x8xbf16>
    %5 = tpu.transpose %3, [1, 0] : vector<8x8xbf16> -> vector<8x8xbf16>
    %cst = arith.constant dense<0.000000e+00> : vector<8x8xf32>
    %6 = tpu.matmul %2, %5, %cst {dimension_numbers = #tpu.dot_dimension_numbers<[1], [0], [0], [1], [0, 0, 1, 1], [], []>} : vector<8x8xbf16>, vector<8x8xbf16>, vector<8x8xf32> -> vector<8x8xf32>
    %cst_2 = arith.constant 0.353553385 : f32
    %7 = vector.broadcast %cst_2 : f32 to vector<8x8xf32>
    %8 = arith.mulf %6, %7 : vector<8x8xf32>
    %cst_3 = arith.constant dense<0xFF800000> : vector<8xf32>
    %9 = vector.multi_reduction <maximumf>, %8, %cst_3 [1] : vector<8x8xf32> to vector<8xf32>
    %10 = vector.shape_cast %9 : vector<8xf32> to vector<8x1xf32>
    %11 = vector.broadcast %10 : vector<8x1xf32> to vector<8x8xf32>
    %12 = arith.subf %8, %11 : vector<8x8xf32>
    %13 = math.exp %12 : vector<8x8xf32>
    %cst_4 = arith.constant dense<0.000000e+00> : vector<8xf32>
    %14 = vector.multi_reduction <add>, %13, %cst_4 [1] : vector<8x8xf32> to vector<8xf32>
    %15 = vector.shape_cast %14 : vector<8xf32> to vector<8x1xf32>
    %16 = tpu.reciprocal %15 {approx = true} : vector<8x1xf32> -> vector<8x1xf32>
    %17 = vector.broadcast %16 : vector<8x1xf32> to vector<8x8xf32>
    %18 = arith.mulf %13, %17 : vector<8x8xf32>
    %19 = arith.truncf %18 : vector<8x8xf32> to vector<8x8xbf16>
    %cst_5 = arith.constant dense<0.000000e+00> : vector<8x8xf32>
    %20 = tpu.matmul %19, %4, %cst_5 {dimension_numbers = #tpu.dot_dimension_numbers<[1], [0], [0], [1], [0, 0, 1, 1], [], []>} : vector<8x8xbf16>, vector<8x8xbf16>, vector<8x8xf32> -> vector<8x8xf32>
    %21 = vector.extract_strided_slice %1 {offsets = [0, 8], sizes = [8, 8], strides = [1, 1]} : vector<8x96xbf16> to vector<8x8xbf16>
    %22 = vector.extract_strided_slice %1 {offsets = [0, 40], sizes = [8, 8], strides = [1, 1]} : vector<8x96xbf16> to vector<8x8xbf16>
    %23 = vector.extract_strided_slice %1 {offsets = [0, 72], sizes = [8, 8], strides = [1, 1]} : vector<8x96xbf16> to vector<8x8xbf16>
    %24 = tpu.transpose %22, [1, 0] : vector<8x8xbf16> -> vector<8x8xbf16>
    %cst_6 = arith.constant dense<0.000000e+00> : vector<8x8xf32>
    %25 = tpu.matmul %21, %24, %cst_6 {dimension_numbers = #tpu.dot_dimension_numbers<[1], [0], [0], [1], [0, 0, 1, 1], [], []>} : vector<8x8xbf16>, vector<8x8xbf16>, vector<8x8xf32> -> vector<8x8xf32>
    %cst_7 = arith.constant 0.353553385 : f32
    %26 = vector.broadcast %cst_7 : f32 to vector<8x8xf32>
    %27 = arith.mulf %25, %26 : vector<8x8xf32>
    %cst_8 = arith.constant dense<0xFF800000> : vector<8xf32>
    %28 = vector.multi_reduction <maximumf>, %27, %cst_8 [1] : vector<8x8xf32> to vector<8xf32>
    %29 = vector.shape_cast %28 : vector<8xf32> to vector<8x1xf32>
    %30 = vector.broadcast %29 : vector<8x1xf32> to vector<8x8xf32>
    %31 = arith.subf %27, %30 : vector<8x8xf32>
    %32 = math.exp %31 : vector<8x8xf32>
    %cst_9 = arith.constant dense<0.000000e+00> : vector<8xf32>
    %33 = vector.multi_reduction <add>, %32, %cst_9 [1] : vector<8x8xf32> to vector<8xf32>
    %34 = vector.shape_cast %33 : vector<8xf32> to vector<8x1xf32>
    %35 = tpu.reciprocal %34 {approx = true} : vector<8x1xf32> -> vector<8x1xf32>
    %36 = vector.broadcast %35 : vector<8x1xf32> to vector<8x8xf32>
    %37 = arith.mulf %32, %36 : vector<8x8xf32>
    %38 = arith.truncf %37 : vector<8x8xf32> to vector<8x8xbf16>
    %cst_10 = arith.constant dense<0.000000e+00> : vector<8x8xf32>
    %39 = tpu.matmul %38, %23, %cst_10 {dimension_numbers = #tpu.dot_dimension_numbers<[1], [0], [0], [1], [0, 0, 1, 1], [], []>} : vector<8x8xbf16>, vector<8x8xbf16>, vector<8x8xf32> -> vector<8x8xf32>
    %40 = vector.extract_strided_slice %1 {offsets = [0, 16], sizes = [8, 8], strides = [1, 1]} : vector<8x96xbf16> to vector<8x8xbf16>
    %41 = vector.extract_strided_slice %1 {offsets = [0, 48], sizes = [8, 8], strides = [1, 1]} : vector<8x96xbf16> to vector<8x8xbf16>
    %42 = vector.extract_strided_slice %1 {offsets = [0, 80], sizes = [8, 8], strides = [1, 1]} : vector<8x96xbf16> to vector<8x8xbf16>
    %43 = tpu.transpose %41, [1, 0] : vector<8x8xbf16> -> vector<8x8xbf16>
    %cst_11 = arith.constant dense<0.000000e+00> : vector<8x8xf32>
    %44 = tpu.matmul %40, %43, %cst_11 {dimension_numbers = #tpu.dot_dimension_numbers<[1], [0], [0], [1], [0, 0, 1, 1], [], []>} : vector<8x8xbf16>, vector<8x8xbf16>, vector<8x8xf32> -> vector<8x8xf32>
    %cst_12 = arith.constant 0.353553385 : f32
    %45 = vector.broadcast %cst_12 : f32 to vector<8x8xf32>
    %46 = arith.mulf %44, %45 : vector<8x8xf32>
    %cst_13 = arith.constant dense<0xFF800000> : vector<8xf32>
    %47 = vector.multi_reduction <maximumf>, %46, %cst_13 [1] : vector<8x8xf32> to vector<8xf32>
    %48 = vector.shape_cast %47 : vector<8xf32> to vector<8x1xf32>
    %49 = vector.broadcast %48 : vector<8x1xf32> to vector<8x8xf32>
    %50 = arith.subf %46, %49 : vector<8x8xf32>
    %51 = math.exp %50 : vector<8x8xf32>
    %cst_14 = arith.constant dense<0.000000e+00> : vector<8xf32>
    %52 = vector.multi_reduction <add>, %51, %cst_14 [1] : vector<8x8xf32> to vector<8xf32>
    %53 = vector.shape_cast %52 : vector<8xf32> to vector<8x1xf32>
    %54 = tpu.reciprocal %53 {approx = true} : vector<8x1xf32> -> vector<8x1xf32>
    %55 = vector.broadcast %54 : vector<8x1xf32> to vector<8x8xf32>
    %56 = arith.mulf %51, %55 : vector<8x8xf32>
    %57 = arith.truncf %56 : vector<8x8xf32> to vector<8x8xbf16>
    %cst_15 = arith.constant dense<0.000000e+00> : vector<8x8xf32>
    %58 = tpu.matmul %57, %42, %cst_15 {dimension_numbers = #tpu.dot_dimension_numbers<[1], [0], [0], [1], [0, 0, 1, 1], [], []>} : vector<8x8xbf16>, vector<8x8xbf16>, vector<8x8xf32> -> vector<8x8xf32>
    %59 = vector.extract_strided_slice %1 {offsets = [0, 24], sizes = [8, 8], strides = [1, 1]} : vector<8x96xbf16> to vector<8x8xbf16>
    %60 = vector.extract_strided_slice %1 {offsets = [0, 56], sizes = [8, 8], strides = [1, 1]} : vector<8x96xbf16> to vector<8x8xbf16>
    %61 = vector.extract_strided_slice %1 {offsets = [0, 88], sizes = [8, 8], strides = [1, 1]} : vector<8x96xbf16> to vector<8x8xbf16>
    %62 = tpu.transpose %60, [1, 0] : vector<8x8xbf16> -> vector<8x8xbf16>
    %cst_16 = arith.constant dense<0.000000e+00> : vector<8x8xf32>
    %63 = tpu.matmul %59, %62, %cst_16 {dimension_numbers = #tpu.dot_dimension_numbers<[1], [0], [0], [1], [0, 0, 1, 1], [], []>} : vector<8x8xbf16>, vector<8x8xbf16>, vector<8x8xf32> -> vector<8x8xf32>
    %cst_17 = arith.constant 0.353553385 : f32
    %64 = vector.broadcast %cst_17 : f32 to vector<8x8xf32>
    %65 = arith.mulf %63, %64 : vector<8x8xf32>
    %cst_18 = arith.constant dense<0xFF800000> : vector<8xf32>
    %66 = vector.multi_reduction <maximumf>, %65, %cst_18 [1] : vector<8x8xf32> to vector<8xf32>
    %67 = vector.shape_cast %66 : vector<8xf32> to vector<8x1xf32>
    %68 = vector.broadcast %67 : vector<8x1xf32> to vector<8x8xf32>
    %69 = arith.subf %65, %68 : vector<8x8xf32>
    %70 = math.exp %69 : vector<8x8xf32>
    %cst_19 = arith.constant dense<0.000000e+00> : vector<8xf32>
    %71 = vector.multi_reduction <add>, %70, %cst_19 [1] : vector<8x8xf32> to vector<8xf32>
    %72 = vector.shape_cast %71 : vector<8xf32> to vector<8x1xf32>
    %73 = tpu.reciprocal %72 {approx = true} : vector<8x1xf32> -> vector<8x1xf32>
    %74 = vector.broadcast %73 : vector<8x1xf32> to vector<8x8xf32>
    %75 = arith.mulf %70, %74 : vector<8x8xf32>
    %76 = arith.truncf %75 : vector<8x8xf32> to vector<8x8xbf16>
    %cst_20 = arith.constant dense<0.000000e+00> : vector<8x8xf32>
    %77 = tpu.matmul %76, %61, %cst_20 {dimension_numbers = #tpu.dot_dimension_numbers<[1], [0], [0], [1], [0, 0, 1, 1], [], []>} : vector<8x8xbf16>, vector<8x8xbf16>, vector<8x8xf32> -> vector<8x8xf32>
    %78 = tpu.concatenate %20, %39, %58, %77 in 1 : vector<8x8xf32>, vector<8x8xf32>, vector<8x8xf32>, vector<8x8xf32> -> vector<8x32xf32>
    %79 = arith.truncf %78 : vector<8x32xf32> to vector<8x32xbf16>
    %c0_21 = arith.constant 0 : index
    %c0_22 = arith.constant 0 : index
    %c0_23 = arith.constant 0 : index
    %80 = vector.load %arg2[%c0_21, %c0_22, %c0_23] : memref<1x8x32xbf16, #tpu.memory_space<vmem>>, vector<1x8x32xbf16>
    %81 = vector.shape_cast %80 : vector<1x8x32xbf16> to vector<8x32xbf16>
    %82 = vector.shape_cast %79 : vector<8x32xbf16> to vector<1x8x32xbf16>
    tpu.vector_store %arg2[%c0_21, %c0_22, %c0_23], %82 {strides = array<i32>} : memref<1x8x32xbf16, #tpu.memory_space<vmem>>, vector<1x8x32xbf16>,
    return
  }
  func.func @transform_0(%arg0: i32) -> (i32, i32, i32) {
    %c0_i32 = arith.constant 0 : i32
    %c0_i32_0 = arith.constant 0 : i32
    %c0_i32_1 = arith.constant 0 : i32
    return %arg0, %c0_i32, %c0_i32_0 : i32, i32, i32
  }
  func.func @transform_1(%arg0: i32) -> (i32, i32, i32) {
    %c0_i32 = arith.constant 0 : i32
    %c0_i32_0 = arith.constant 0 : i32
    %c0_i32_1 = arith.constant 0 : i32
    return %arg0, %c0_i32, %c0_i32_0 : i32, i32, i32
  }
}

module attributes {stable_mosaic.version = 11 : i64} {
  func.func @_matmul_res_ln_kernel(%arg0: i32, %arg1: i32, %arg2: memref<16x128xbf16, #tpu.memory_space<vmem>>, %arg3: memref<128x32xbf16, #tpu.memory_space<vmem>>, %arg4: memref<1x32xf32, #tpu.memory_space<vmem>>, %arg5: memref<16x32xbf16, #tpu.memory_space<vmem>>, %arg6: memref<1x32xf32, #tpu.memory_space<vmem>>, %arg7: memref<1x32xf32, #tpu.memory_space<vmem>>, %arg8: memref<16x32xbf16, #tpu.memory_space<vmem>>, %arg9: memref<16x32xf32, #tpu.memory_space<vmem>>) attributes {dimension_semantics = [#tpu.dimension_semantics<parallel>, #tpu.dimension_semantics<arbitrary>], iteration_bounds = array<i64: 1, 1>, scalar_prefetch = 0 : i64, scratch_operands = 1 : i64, tpu.core_type = #tpu.core_type<tc>, window_params = [{transform_indices = @transform_0, window_bounds = array<i64: 16, 128>}, {transform_indices = @transform_1, window_bounds = array<i64: 128, 32>}, {pipeline_mode = #tpu.pipeline_mode<synchronous>, transform_indices = @transform_2, window_bounds = array<i64: 1, 32>}, {transform_indices = @transform_3, window_bounds = array<i64: 16, 32>}, {pipeline_mode = #tpu.pipeline_mode<synchronous>, transform_indices = @transform_4, window_bounds = array<i64: 1, 32>}, {pipeline_mode = #tpu.pipeline_mode<synchronous>, transform_indices = @transform_5, window_bounds = array<i64: 1, 32>}, {transform_indices = @transform_6, window_bounds = array<i64: 16, 32>}]} {
    %c0_i32 = arith.constant 0 : i32
    %0 = arith.cmpi eq, %arg1, %c0_i32 : i32
    %1 = arith.extui %0 : i1 to i32
    %c0_i32_0 = arith.constant 0 : i32
    %2 = arith.cmpi ne, %1, %c0_i32_0 : i32
    scf.if %2 {
      %cst_10 = arith.constant 0.000000e+00 : f32
      %12 = vector.broadcast %cst_10 : f32 to vector<16x32xf32>
      %c0_11 = arith.constant 0 : index
      %c0_12 = arith.constant 0 : index
      %13 = vector.load %arg9[%c0_11, %c0_12] : memref<16x32xf32, #tpu.memory_space<vmem>>, vector<16x32xf32>
      tpu.vector_store %arg9[%c0_11, %c0_12], %12 {strides = array<i32>} : memref<16x32xf32, #tpu.memory_space<vmem>>, vector<16x32xf32>,
    } else {
    }
    %c0 = arith.constant 0 : index
    %c0_1 = arith.constant 0 : index
    %3 = vector.load %arg9[%c0, %c0_1] : memref<16x32xf32, #tpu.memory_space<vmem>>, vector<16x32xf32>
    %c0_2 = arith.constant 0 : index
    %c0_3 = arith.constant 0 : index
    %4 = vector.load %arg2[%c0_2, %c0_3] : memref<16x128xbf16, #tpu.memory_space<vmem>>, vector<16x128xbf16>
    %c0_4 = arith.constant 0 : index
    %c0_5 = arith.constant 0 : index
    %5 = vector.load %arg3[%c0_4, %c0_5] : memref<128x32xbf16, #tpu.memory_space<vmem>>, vector<128x32xbf16>
    %cst = arith.constant dense<0.000000e+00> : vector<16x32xf32>
    %6 = tpu.matmul %4, %5, %cst {dimension_numbers = #tpu.dot_dimension_numbers<[1], [0], [0], [1], [0, 0, 1, 1], [], []>} : vector<16x128xbf16>, vector<128x32xbf16>, vector<16x32xf32> -> vector<16x32xf32>
    %7 = arith.addf %3, %6 : vector<16x32xf32>
    %c0_6 = arith.constant 0 : index
    %c0_7 = arith.constant 0 : index
    %8 = vector.load %arg9[%c0_6, %c0_7] : memref<16x32xf32, #tpu.memory_space<vmem>>, vector<16x32xf32>
    tpu.vector_store %arg9[%c0_6, %c0_7], %7 {strides = array<i32>} : memref<16x32xf32, #tpu.memory_space<vmem>>, vector<16x32xf32>,
    %c0_i32_8 = arith.constant 0 : i32
    %9 = arith.cmpi eq, %arg1, %c0_i32_8 : i32
    %10 = arith.extui %9 : i1 to i32
    %c0_i32_9 = arith.constant 0 : i32
    %11 = arith.cmpi ne, %10, %c0_i32_9 : i32
    scf.if %11 {
      %c0_10 = arith.constant 0 : index
      %c0_11 = arith.constant 0 : index
      %12 = vector.load %arg9[%c0_10, %c0_11] : memref<16x32xf32, #tpu.memory_space<vmem>>, vector<16x32xf32>
      %c0_12 = arith.constant 0 : index
      %c0_13 = arith.constant 0 : index
      %13 = vector.load %arg4[%c0_12, %c0_13] : memref<1x32xf32, #tpu.memory_space<vmem>>, vector<1x32xf32>
      %14 = vector.broadcast %13 : vector<1x32xf32> to vector<16x32xf32>
      %15 = arith.addf %12, %14 : vector<16x32xf32>
      %c0_14 = arith.constant 0 : index
      %c0_15 = arith.constant 0 : index
      %16 = vector.load %arg5[%c0_14, %c0_15] : memref<16x32xbf16, #tpu.memory_space<vmem>>, vector<16x32xbf16>
      %17 = arith.extf %16 : vector<16x32xbf16> to vector<16x32xf32>
      %18 = arith.addf %15, %17 : vector<16x32xf32>
      %cst_16 = arith.constant dense<0.000000e+00> : vector<16xf32>
      %19 = vector.multi_reduction <add>, %18, %cst_16 [1] : vector<16x32xf32> to vector<16xf32>
      %20 = vector.shape_cast %19 : vector<16xf32> to vector<16x1xf32>
      %cst_17 = arith.constant 3.200000e+01 : f32
      %21 = vector.broadcast %cst_17 : f32 to vector<16x1xf32>
      %22 = arith.divf %20, %21 : vector<16x1xf32>
      %23 = vector.broadcast %22 : vector<16x1xf32> to vector<16x32xf32>
      %24 = arith.subf %18, %23 : vector<16x32xf32>
      %25 = arith.mulf %24, %24 : vector<16x32xf32>
      %cst_18 = arith.constant dense<0.000000e+00> : vector<16xf32>
      %26 = vector.multi_reduction <add>, %25, %cst_18 [1] : vector<16x32xf32> to vector<16xf32>
      %27 = vector.shape_cast %26 : vector<16xf32> to vector<16x1xf32>
      %cst_19 = arith.constant 3.200000e+01 : f32
      %28 = vector.broadcast %cst_19 : f32 to vector<16x1xf32>
      %29 = arith.divf %27, %28 : vector<16x1xf32>
      %30 = vector.broadcast %22 : vector<16x1xf32> to vector<16x32xf32>
      %31 = arith.subf %18, %30 : vector<16x32xf32>
      %cst_20 = arith.constant 9.99999974E-6 : f32
      %32 = vector.broadcast %cst_20 : f32 to vector<16x1xf32>
      %33 = arith.addf %29, %32 : vector<16x1xf32>
      %34 = math.rsqrt %33 : vector<16x1xf32>
      %35 = vector.broadcast %34 : vector<16x1xf32> to vector<16x32xf32>
      %36 = arith.mulf %31, %35 : vector<16x32xf32>
      %c0_21 = arith.constant 0 : index
      %c0_22 = arith.constant 0 : index
      %37 = vector.load %arg6[%c0_21, %c0_22] : memref<1x32xf32, #tpu.memory_space<vmem>>, vector<1x32xf32>
      %38 = vector.broadcast %37 : vector<1x32xf32> to vector<16x32xf32>
      %39 = arith.mulf %36, %38 : vector<16x32xf32>
      %c0_23 = arith.constant 0 : index
      %c0_24 = arith.constant 0 : index
      %40 = vector.load %arg7[%c0_23, %c0_24] : memref<1x32xf32, #tpu.memory_space<vmem>>, vector<1x32xf32>
      %41 = vector.broadcast %40 : vector<1x32xf32> to vector<16x32xf32>
      %42 = arith.addf %39, %41 : vector<16x32xf32>
      %43 = arith.truncf %42 : vector<16x32xf32> to vector<16x32xbf16>
      %c0_25 = arith.constant 0 : index
      %c0_26 = arith.constant 0 : index
      %44 = vector.load %arg8[%c0_25, %c0_26] : memref<16x32xbf16, #tpu.memory_space<vmem>>, vector<16x32xbf16>
      tpu.vector_store %arg8[%c0_25, %c0_26], %43 {strides = array<i32>} : memref<16x32xbf16, #tpu.memory_space<vmem>>, vector<16x32xbf16>,
    } else {
    }
    return
  }
  func.func @transform_0(%arg0: i32, %arg1: i32) -> (i32, i32) {
    %c0_i32 = arith.constant 0 : i32
    return %arg0, %arg1 : i32, i32
  }
  func.func @transform_1(%arg0: i32, %arg1: i32) -> (i32, i32) {
    %c0_i32 = arith.constant 0 : i32
    %c0_i32_0 = arith.constant 0 : i32
    return %arg1, %c0_i32 : i32, i32
  }
  func.func @transform_2(%arg0: i32, %arg1: i32) -> (i32, i32) {
    %c0_i32 = arith.constant 0 : i32
    %c0_i32_0 = arith.constant 0 : i32
    %c0_i32_1 = arith.constant 0 : i32
    return %c0_i32, %c0_i32_0 : i32, i32
  }
  func.func @transform_3(%arg0: i32, %arg1: i32) -> (i32, i32) {
    %c0_i32 = arith.constant 0 : i32
    %c0_i32_0 = arith.constant 0 : i32
    return %arg0, %c0_i32 : i32, i32
  }
  func.func @transform_4(%arg0: i32, %arg1: i32) -> (i32, i32) {
    %c0_i32 = arith.constant 0 : i32
    %c0_i32_0 = arith.constant 0 : i32
    %c0_i32_1 = arith.constant 0 : i32
    return %c0_i32, %c0_i32_0 : i32, i32
  }
  func.func @transform_5(%arg0: i32, %arg1: i32) -> (i32, i32) {
    %c0_i32 = arith.constant 0 : i32
    %c0_i32_0 = arith.constant 0 : i32
    %c0_i32_1 = arith.constant 0 : i32
    return %c0_i32, %c0_i32_0 : i32, i32
  }
  func.func @transform_6(%arg0: i32, %arg1: i32) -> (i32, i32) {
    %c0_i32 = arith.constant 0 : i32
    %c0_i32_0 = arith.constant 0 : i32
    return %arg0, %c0_i32 : i32, i32
  }
}

module attributes {stable_mosaic.version = 11 : i64} {
  func.func @_matmul_kernel(%arg0: i32, %arg1: i32, %arg2: i32, %arg3: memref<16x32xbf16, #tpu.memory_space<vmem>>, %arg4: memref<32x128xbf16, #tpu.memory_space<vmem>>, %arg5: memref<1x128xf32, #tpu.memory_space<vmem>>, %arg6: memref<16x128xbf16, #tpu.memory_space<vmem>>, %arg7: memref<16x128xf32, #tpu.memory_space<vmem>>) attributes {dimension_semantics = [#tpu.dimension_semantics<parallel>, #tpu.dimension_semantics<parallel>, #tpu.dimension_semantics<arbitrary>], iteration_bounds = array<i64: 1, 1, 1>, scalar_prefetch = 0 : i64, scratch_operands = 1 : i64, tpu.core_type = #tpu.core_type<tc>, window_params = [{transform_indices = @transform_0, window_bounds = array<i64: 16, 32>}, {transform_indices = @transform_1, window_bounds = array<i64: 32, 128>}, {transform_indices = @transform_2, window_bounds = array<i64: 1, 128>}, {transform_indices = @transform_3, window_bounds = array<i64: 16, 128>}]} {
    %c0_i32 = arith.constant 0 : i32
    %0 = arith.cmpi eq, %arg2, %c0_i32 : i32
    %1 = arith.extui %0 : i1 to i32
    %c0_i32_0 = arith.constant 0 : i32
    %2 = arith.cmpi ne, %1, %c0_i32_0 : i32
    scf.if %2 {
      %cst_10 = arith.constant 0.000000e+00 : f32
      %12 = vector.broadcast %cst_10 : f32 to vector<16x128xf32>
      %c0_11 = arith.constant 0 : index
      %c0_12 = arith.constant 0 : index
      %13 = vector.load %arg7[%c0_11, %c0_12] : memref<16x128xf32, #tpu.memory_space<vmem>>, vector<16x128xf32>
      tpu.vector_store %arg7[%c0_11, %c0_12], %12 {strides = array<i32>} : memref<16x128xf32, #tpu.memory_space<vmem>>, vector<16x128xf32>,
    } else {
    }
    %c0 = arith.constant 0 : index
    %c0_1 = arith.constant 0 : index
    %3 = vector.load %arg7[%c0, %c0_1] : memref<16x128xf32, #tpu.memory_space<vmem>>, vector<16x128xf32>
    %c0_2 = arith.constant 0 : index
    %c0_3 = arith.constant 0 : index
    %4 = vector.load %arg3[%c0_2, %c0_3] : memref<16x32xbf16, #tpu.memory_space<vmem>>, vector<16x32xbf16>
    %c0_4 = arith.constant 0 : index
    %c0_5 = arith.constant 0 : index
    %5 = vector.load %arg4[%c0_4, %c0_5] : memref<32x128xbf16, #tpu.memory_space<vmem>>, vector<32x128xbf16>
    %cst = arith.constant dense<0.000000e+00> : vector<16x128xf32>
    %6 = tpu.matmul %4, %5, %cst {dimension_numbers = #tpu.dot_dimension_numbers<[1], [0], [0], [1], [0, 0, 1, 1], [], []>} : vector<16x32xbf16>, vector<32x128xbf16>, vector<16x128xf32> -> vector<16x128xf32>
    %7 = arith.addf %3, %6 : vector<16x128xf32>
    %c0_6 = arith.constant 0 : index
    %c0_7 = arith.constant 0 : index
    %8 = vector.load %arg7[%c0_6, %c0_7] : memref<16x128xf32, #tpu.memory_space<vmem>>, vector<16x128xf32>
    tpu.vector_store %arg7[%c0_6, %c0_7], %7 {strides = array<i32>} : memref<16x128xf32, #tpu.memory_space<vmem>>, vector<16x128xf32>,
    %c0_i32_8 = arith.constant 0 : i32
    %9 = arith.cmpi eq, %arg2, %c0_i32_8 : i32
    %10 = arith.extui %9 : i1 to i32
    %c0_i32_9 = arith.constant 0 : i32
    %11 = arith.cmpi ne, %10, %c0_i32_9 : i32
    scf.if %11 {
      %c0_10 = arith.constant 0 : index
      %c0_11 = arith.constant 0 : index
      %12 = vector.load %arg7[%c0_10, %c0_11] : memref<16x128xf32, #tpu.memory_space<vmem>>, vector<16x128xf32>
      %c0_12 = arith.constant 0 : index
      %c0_13 = arith.constant 0 : index
      %13 = vector.load %arg5[%c0_12, %c0_13] : memref<1x128xf32, #tpu.memory_space<vmem>>, vector<1x128xf32>
      %14 = vector.broadcast %13 : vector<1x128xf32> to vector<16x128xf32>
      %15 = arith.addf %12, %14 : vector<16x128xf32>
      %cst_14 = arith.constant 5.000000e-01 : f32
      %16 = vector.broadcast %cst_14 : f32 to vector<16x128xf32>
      %17 = arith.mulf %16, %15 : vector<16x128xf32>
      %cst_15 = arith.constant 0.707106769 : f32
      %18 = vector.broadcast %cst_15 : f32 to vector<16x128xf32>
      %19 = arith.mulf %15, %18 : vector<16x128xf32>
      %20 = math.erf %19 : vector<16x128xf32>
      %cst_16 = arith.constant 1.000000e+00 : f32
      %21 = vector.broadcast %cst_16 : f32 to vector<16x128xf32>
      %22 = arith.addf %21, %20 : vector<16x128xf32>
      %23 = arith.mulf %17, %22 : vector<16x128xf32>
      %24 = arith.truncf %23 : vector<16x128xf32> to vector<16x128xbf16>
      %c0_17 = arith.constant 0 : index
      %c0_18 = arith.constant 0 : index
      %25 = vector.load %arg6[%c0_17, %c0_18] : memref<16x128xbf16, #tpu.memory_space<vmem>>, vector<16x128xbf16>
      tpu.vector_store %arg6[%c0_17, %c0_18], %24 {strides = array<i32>} : memref<16x128xbf16, #tpu.memory_space<vmem>>, vector<16x128xbf16>,
    } else {
    }
    return
  }
  func.func @transform_0(%arg0: i32, %arg1: i32, %arg2: i32) -> (i32, i32) {
    %c0_i32 = arith.constant 0 : i32
    return %arg0, %arg2 : i32, i32
  }
  func.func @transform_1(%arg0: i32, %arg1: i32, %arg2: i32) -> (i32, i32) {
    %c0_i32 = arith.constant 0 : i32
    return %arg2, %arg1 : i32, i32
  }
  func.func @transform_2(%arg0: i32, %arg1: i32, %arg2: i32) -> (i32, i32) {
    %c0_i32 = arith.constant 0 : i32
    %c0_i32_0 = arith.constant 0 : i32
    return %c0_i32, %arg1 : i32, i32
  }
  func.func @transform_3(%arg0: i32, %arg1: i32, %arg2: i32) -> (i32, i32) {
    %c0_i32 = arith.constant 0 : i32
    return %arg0, %arg1 : i32, i32
  }
}

module attributes {stable_mosaic.version = 11 : i64} {
  func.func @_matmul_kernel(%arg0: i32, %arg1: i32, %arg2: i32, %arg3: memref<16x32xbf16, #tpu.memory_space<vmem>>, %arg4: memref<32x64xbf16, #tpu.memory_space<vmem>>, %arg5: memref<1x64xf32, #tpu.memory_space<vmem>>, %arg6: memref<16x64xf32, #tpu.memory_space<vmem>>, %arg7: memref<16x64xf32, #tpu.memory_space<vmem>>) attributes {dimension_semantics = [#tpu.dimension_semantics<parallel>, #tpu.dimension_semantics<parallel>, #tpu.dimension_semantics<arbitrary>], iteration_bounds = array<i64: 1, 1, 1>, scalar_prefetch = 0 : i64, scratch_operands = 1 : i64, tpu.core_type = #tpu.core_type<tc>, window_params = [{transform_indices = @transform_0, window_bounds = array<i64: 16, 32>}, {transform_indices = @transform_1, window_bounds = array<i64: 32, 64>}, {transform_indices = @transform_2, window_bounds = array<i64: 1, 64>}, {transform_indices = @transform_3, window_bounds = array<i64: 16, 64>}]} {
    %c0_i32 = arith.constant 0 : i32
    %0 = arith.cmpi eq, %arg2, %c0_i32 : i32
    %1 = arith.extui %0 : i1 to i32
    %c0_i32_0 = arith.constant 0 : i32
    %2 = arith.cmpi ne, %1, %c0_i32_0 : i32
    scf.if %2 {
      %cst_10 = arith.constant 0.000000e+00 : f32
      %12 = vector.broadcast %cst_10 : f32 to vector<16x64xf32>
      %c0_11 = arith.constant 0 : index
      %c0_12 = arith.constant 0 : index
      %13 = vector.load %arg7[%c0_11, %c0_12] : memref<16x64xf32, #tpu.memory_space<vmem>>, vector<16x64xf32>
      tpu.vector_store %arg7[%c0_11, %c0_12], %12 {strides = array<i32>} : memref<16x64xf32, #tpu.memory_space<vmem>>, vector<16x64xf32>,
    } else {
    }
    %c0 = arith.constant 0 : index
    %c0_1 = arith.constant 0 : index
    %3 = vector.load %arg7[%c0, %c0_1] : memref<16x64xf32, #tpu.memory_space<vmem>>, vector<16x64xf32>
    %c0_2 = arith.constant 0 : index
    %c0_3 = arith.constant 0 : index
    %4 = vector.load %arg3[%c0_2, %c0_3] : memref<16x32xbf16, #tpu.memory_space<vmem>>, vector<16x32xbf16>
    %c0_4 = arith.constant 0 : index
    %c0_5 = arith.constant 0 : index
    %5 = vector.load %arg4[%c0_4, %c0_5] : memref<32x64xbf16, #tpu.memory_space<vmem>>, vector<32x64xbf16>
    %cst = arith.constant dense<0.000000e+00> : vector<16x64xf32>
    %6 = tpu.matmul %4, %5, %cst {dimension_numbers = #tpu.dot_dimension_numbers<[1], [0], [0], [1], [0, 0, 1, 1], [], []>} : vector<16x32xbf16>, vector<32x64xbf16>, vector<16x64xf32> -> vector<16x64xf32>
    %7 = arith.addf %3, %6 : vector<16x64xf32>
    %c0_6 = arith.constant 0 : index
    %c0_7 = arith.constant 0 : index
    %8 = vector.load %arg7[%c0_6, %c0_7] : memref<16x64xf32, #tpu.memory_space<vmem>>, vector<16x64xf32>
    tpu.vector_store %arg7[%c0_6, %c0_7], %7 {strides = array<i32>} : memref<16x64xf32, #tpu.memory_space<vmem>>, vector<16x64xf32>,
    %c0_i32_8 = arith.constant 0 : i32
    %9 = arith.cmpi eq, %arg2, %c0_i32_8 : i32
    %10 = arith.extui %9 : i1 to i32
    %c0_i32_9 = arith.constant 0 : i32
    %11 = arith.cmpi ne, %10, %c0_i32_9 : i32
    scf.if %11 {
      %c0_10 = arith.constant 0 : index
      %c0_11 = arith.constant 0 : index
      %12 = vector.load %arg7[%c0_10, %c0_11] : memref<16x64xf32, #tpu.memory_space<vmem>>, vector<16x64xf32>
      %c0_12 = arith.constant 0 : index
      %c0_13 = arith.constant 0 : index
      %13 = vector.load %arg5[%c0_12, %c0_13] : memref<1x64xf32, #tpu.memory_space<vmem>>, vector<1x64xf32>
      %14 = vector.broadcast %13 : vector<1x64xf32> to vector<16x64xf32>
      %15 = arith.addf %12, %14 : vector<16x64xf32>
      %cst_14 = arith.constant dense<0xFF800000> : vector<16xf32>
      %16 = vector.multi_reduction <maximumf>, %15, %cst_14 [1] : vector<16x64xf32> to vector<16xf32>
      %17 = vector.shape_cast %16 : vector<16xf32> to vector<16x1xf32>
      %18 = vector.broadcast %17 : vector<16x1xf32> to vector<16x64xf32>
      %19 = arith.subf %15, %18 : vector<16x64xf32>
      %20 = math.exp %19 : vector<16x64xf32>
      %cst_15 = arith.constant dense<0.000000e+00> : vector<16xf32>
      %21 = vector.multi_reduction <add>, %20, %cst_15 [1] : vector<16x64xf32> to vector<16xf32>
      %22 = vector.shape_cast %21 : vector<16xf32> to vector<16x1xf32>
      %23 = vector.broadcast %22 : vector<16x1xf32> to vector<16x64xf32>
      %24 = arith.divf %20, %23 : vector<16x64xf32>
      %c0_16 = arith.constant 0 : index
      %c0_17 = arith.constant 0 : index
      %25 = vector.load %arg6[%c0_16, %c0_17] : memref<16x64xf32, #tpu.memory_space<vmem>>, vector<16x64xf32>
      tpu.vector_store %arg6[%c0_16, %c0_17], %24 {strides = array<i32>} : memref<16x64xf32, #tpu.memory_space<vmem>>, vector<16x64xf32>,
    } else {
    }
    return
  }
  func.func @transform_0(%arg0: i32, %arg1: i32, %arg2: i32) -> (i32, i32) {
    %c0_i32 = arith.constant 0 : i32
    return %arg0, %arg2 : i32, i32
  }
  func.func @transform_1(%arg0: i32, %arg1: i32, %arg2: i32) -> (i32, i32) {
    %c0_i32 = arith.constant 0 : i32
    return %arg2, %arg1 : i32, i32
  }
  func.func @transform_2(%arg0: i32, %arg1: i32, %arg2: i32) -> (i32, i32) {
    %c0_i32 = arith.constant 0 : i32
    %c0_i32_0 = arith.constant 0 : i32
    return %c0_i32, %arg1 : i32, i32
  }
  func.func @transform_3(%arg0: i32, %arg1: i32, %arg2: i32) -> (i32, i32) {
    %c0_i32 = arith.constant 0 : i32
    return %arg0, %arg1 : i32, i32
  }
}

</mosaic_0001>

<llo_original>
// kernel: bert_forward.15
$region0: #{bert_forward.15}
  #allocation0 [shape = 'u32[]', space=smem, size = 0x4, offset = 0x4, fixed_abs, tag = 'smem constant byte address 0x4 - core index']
  #allocation1 [shape = 'u32[72,128]{1,0:T(1,128)}', space=vmem, size = 0x9000, scoped, tag = 'internal scratch']
  #allocation2 [shape = 'f32[16,32]{1,0:T(8,128)}', space=vmem, size = 0x2000, scoped, tag = 'scratch operand']
  %s0 = inlined_call_operand.vmem [shape: bf16[16,32], index: 0, kind: input, shape index: {}]
  %s1 = inlined_call_operand.vmem [shape: bf16[32,32], index: 1, kind: input, shape index: {}]
  %s2 = inlined_call_operand.vmem [shape: f32[1,32], index: 2, kind: input, shape index: {}]
  %s3 = inlined_call_operand.vmem [shape: bf16[16,32], index: 3, kind: input, shape index: {}]
  %s4 = inlined_call_operand.vmem [shape: f32[1,32], index: 4, kind: input, shape index: {}]
  %s5 = inlined_call_operand.vmem [shape: f32[1,32], index: 5, kind: input, shape index: {}]
  %s6 = inlined_call_operand.vmem [shape: bf16[16,32], index: 6, kind: output, shape index: {}]
  %s7 = sld [smem:[#allocation0]]
  $region42: #{bert_forward.15} parent=0
    _
  %s9 = ssub.s32 1, %s7
  %s10 = scalar_select 0, %s9, %s7
  // Predicated region
  $region2: #{bert_forward.15} parent=0 // pred_check
    _
  $region3: #{bert_forward.15} parent=0 // pred_check_branch
    %12 = sbr.rel (0) target = $region5
  $region4: #{bert_forward.15} parent=0 // pred_region
    _
  $region5: #{bert_forward.15} parent=0 // pred_fallthru
    _
  // Predicated region
  $region6: #{bert_forward.15} parent=0 // pred_check
    _
  $region7: #{bert_forward.15} parent=0 // pred_check_branch
    %14 = sbr.rel (0) target = $region9
  $region8: #{bert_forward.15} parent=0 // pred_region
    _
  $region9: #{bert_forward.15} parent=0 // pred_fallthru
    _
  // Predicated region
  $region10: #{bert_forward.15} parent=0 // pred_check
    _
  $region11: #{bert_forward.15} parent=0 // pred_check_branch
    %16 = sbr.rel (0) target = $region13
  $region12: #{bert_forward.15} parent=0 // pred_region
    _
  $region13: #{bert_forward.15} parent=0 // pred_fallthru
    _
  // Predicated region
  $region14: #{bert_forward.15} parent=0 // pred_check
    _
  $region15: #{bert_forward.15} parent=0 // pred_check_branch
    %18 = sbr.rel (0) target = $region17
  $region16: #{bert_forward.15} parent=0 // pred_region
    _
  $region17: #{bert_forward.15} parent=0 // pred_fallthru
    _
  // Predicated region
  $region18: #{bert_forward.15} parent=0 // pred_check
    _
  $region19: #{bert_forward.15} parent=0 // pred_check_branch
    %20 = sbr.rel (0) target = $region21
  $region20: #{bert_forward.15} parent=0 // pred_region
    _
  $region21: #{bert_forward.15} parent=0 // pred_fallthru
    _
  // Predicated region
  $region22: #{bert_forward.15} parent=0 // pred_check
    _
  $region23: #{bert_forward.15} parent=0 // pred_check_branch
    %22 = sbr.rel (0) target = $region25
  $region24: #{bert_forward.15} parent=0 // pred_region
    _
  $region25: #{bert_forward.15} parent=0 // pred_fallthru
    _
  %p24 = scmp.eq.s32.totalorder 0, 0
  // Predicated region
  $region26: #{bert_forward.15} parent=0 // pred_check
    %p25 = pneg %p24
  $region27: #{bert_forward.15} parent=0 // pred_check_branch
    %27 = sbr.rel (%p25) target = $region29
  $region28: #{bert_forward.15} parent=0 // pred_region
    %vm28 = vcmask 261120
    %29 = vst.msk [vmem:[#allocation2] sm:$0xff] %vm28, 0.0
    %30 = vst.msk [vmem:[#allocation2 + $0x8] sm:$0xff] %vm28, 0.0
  $region29: #{bert_forward.15} parent=0 // pred_fallthru
    _
  %v31 = vld [vmem:[#allocation2] sm:$0xff]
  %v32 = vld [vmem:[#allocation2 + $0x8] sm:$0xff]
  %v33 = vld [vmem:[%s0] sm:$0xf]
  %v34 = vld [vmem:[%s0 + $0x4] sm:$0xf]
  %v35 = vld [vmem:[%s1] sm:$0xf]
  %v36 = vld [vmem:[%s1 + $0x4] sm:$0xf]
  %v37 = vld [vmem:[%s1 + $0x8] sm:$0xf]
  %v38 = vld [vmem:[%s1 + $0xc] sm:$0xf]
  %v41 = vunpack.c.l.b16 %v33
  %v42 = vunpack.c.l.b16 %v34
  %v43 = vpack.c.b16 %v42, %v41
  %v48 = vunpack.c.l.b16 %v35
  %v49 = vunpack.c.l.b16 %v36
  %v50 = vunpack.c.l.b16 %v37
  %v51 = vunpack.c.l.b16 %v38
  %v52 = vpack.c.b16 %v49, %v48
  %v53 = vpack.c.b16 %v51, %v50
  %vm56 = vcmask 261120
  %v58 = vsel %vm56, %v43, 0
  %60 = vmatpush.bf16.msra.mxu0 0
  %61 = vmatpush.bf16.msra.mxu0 0
  %62 = vmatpush.bf16.msra.mxu0 0
  %63 = vmatpush.bf16.msra.mxu0 0
  %64 = vmatpush.bf16.msra.mxu0 0
  %65 = vmatpush.bf16.msra.mxu0 0
  %66 = vmatpush.bf16.msra.mxu0 %v53
  %67 = vmatpush.bf16.msra.mxu0 %v52
  %68 = vmatmul.bf16.gmra.mxu0 %v58
  %v69 = vpop.f32.mrf.mxu0
  %v70 = vadd.f32 0.0, %v69
  %v71 = vpop.f32.mrf.mxu0
  %v72 = vadd.f32 0.0, %v71
  %73 = vdwg.mxu0
  %v74 = vadd.f32 %v31, %v70
  %v75 = vadd.f32 %v32, %v72
  %76 = vst.msk [vmem:[#allocation2] sm:$0xff] %vm56, %v74
  %77 = vst.msk [vmem:[#allocation2 + $0x8] sm:$0xff] %vm56, %v75
  // Predicated region
  $region30: #{bert_forward.15} parent=0 // pred_check
    %p78 = pneg %p24
  $region31: #{bert_forward.15} parent=0 // pred_check_branch
    %80 = sbr.rel (%p78) target = $region33
  $region32: #{bert_forward.15} parent=0 // pred_region
    %v81 = vld [vmem:[#allocation2] sm:$0xff]
    %v82 = vld [vmem:[#allocation2 + $0x8] sm:$0xff]
    %v83 = vld [vmem:[%s2] sm:$0x1]
    %v85 = vperm.slane %v83, 0
    %v87 = vadd.f32 %v81, %v85
    %v88 = vadd.f32 %v82, %v85
    %v89 = vld [vmem:[%s3] sm:$0xf]
    %v90 = vld [vmem:[%s3 + $0x4] sm:$0xf]
    %v91 = vunpack.c.l.bf16 %v89
    %v92 = vunpack.c.l.bf16 %v90
    %v93 = vadd.f32 %v87, %v91
    %v94 = vadd.f32 %v88, %v92
    %v95 = vsel %vm56, %v93, 0.0
    %96 = vadd.xlane.f32.xlu0 %v95
    %v97 = vpop.xlane.xlu0 %96
    %v98 = vsel %vm56, %v94, 0.0
    %99 = vadd.xlane.f32.xlu0 %v98
    %v100 = vpop.xlane.xlu0 %99
    %v101 = vrcp.pop 32.0
    %v102 = vmul.f32 32.0, %v101
    %v103 = vsub.f32 1.0, %v102
    %v104 = vmul.f32 %v101, %v103
    %v105 = vadd.f32 %v101, %v104
    %vm106 = vweird.f32 %v101
    %v107 = vsel %vm106, %v101, %v105
    %v108 = vmul.f32 %v97, %v107
    %v109 = vmul.f32 %v100, %v107
    %v110 = vsub.f32 %v93, %v108
    %v111 = vsub.f32 %v94, %v109
    %v112 = vmul.f32 %v110, %v110
    %v113 = vmul.f32 %v111, %v111
    %v114 = vsel %vm56, %v112, 0.0
    %115 = vadd.xlane.f32.xlu0 %v114
    %v116 = vpop.xlane.xlu0 %115
    %v117 = vsel %vm56, %v113, 0.0
    %118 = vadd.xlane.f32.xlu0 %v117
    %v119 = vpop.xlane.xlu0 %118
    %v120 = vmul.f32 %v116, %v107
    %v121 = vmul.f32 %v119, %v107
    %v122 = vadd.f32 %v120, 1e-05
    %v123 = vadd.f32 %v121, 1e-05
    %v124 = vrsqrt.pop %v122
    %v125 = vmul.f32 %v124, %v122
    %v126 = vmul.f32 %v125, %v124
    %v127 = vmul.f32 0.5, %v126
    %v128 = vsub.f32 1.5, %v127
    %v129 = vmul.f32 %v124, %v128
    %vm130 = vweird.f32 %v122
    %vm131 = vweird.f32 %v124
    %vm132 = vmor %vm130, %vm131
    %v133 = vsel %vm132, %v124, %v129
    %v134 = vrsqrt.pop %v123
    %v135 = vmul.f32 %v134, %v123
    %v136 = vmul.f32 %v135, %v134
    %v137 = vmul.f32 0.5, %v136
    %v138 = vsub.f32 1.5, %v137
    %v139 = vmul.f32 %v134, %v138
    %vm140 = vweird.f32 %v123
    %vm141 = vweird.f32 %v134
    %vm142 = vmor %vm140, %vm141
    %v143 = vsel %vm142, %v134, %v139
    %v144 = vmul.f32 %v110, %v133
    %v145 = vmul.f32 %v111, %v143
    %v146 = vld [vmem:[%s4] sm:$0x1]
    %v148 = vperm.slane %v146, 0
    %v150 = vmul.f32 %v144, %v148
    %v151 = vmul.f32 %v145, %v148
    %v152 = vld [vmem:[%s5] sm:$0x1]
    %v154 = vperm.slane %v152, 0
    %v156 = vadd.f32 %v150, %v154
    %v157 = vadd.f32 %v151, %v154
    %v158 = vpack.c.bf16 %v156, %v156
    %v159 = vpack.c.bf16 %v157, %v157
    %vm160 = vcmask 257024
    %161 = vst.msk [vmem:[%s6] sm:$0xf] %vm160, %v158
    %162 = vst.msk [vmem:[%s6 + $0x4] sm:$0xf] %vm160, %v159
  $region33: #{bert_forward.15} parent=0 // pred_fallthru
    _
  // Predicated region
  $region34: #{bert_forward.15} parent=0 // pred_check
    _
  $region35: #{bert_forward.15} parent=0 // pred_check_branch
    %164 = sbr.rel (0) target = $region37
  $region36: #{bert_forward.15} parent=0 // pred_region
    _
  $region37: #{bert_forward.15} parent=0 // pred_fallthru
    _
  // Predicated region
  $region38: #{bert_forward.15} parent=0 // pred_check
    _
  $region39: #{bert_forward.15} parent=0 // pred_check_branch
    %166 = sbr.rel (0) target = $region41
  $region40: #{bert_forward.15} parent=0 // pred_region
    _
  $region41: #{bert_forward.15} parent=0 // pred_fallthru
    _

// kernel: bert_forward.13
$region0: #{bert_forward.13}
  #allocation0 [shape = 'u32[]', space=smem, size = 0x4, offset = 0x4, fixed_abs, tag = 'smem constant byte address 0x4 - core index']
  #allocation1 [shape = 'u32[72,128]{1,0:T(1,128)}', space=vmem, size = 0x9000, scoped, tag = 'internal scratch']
  #allocation2 [shape = 'f32[16,96]{1,0:T(8,128)}', space=vmem, size = 0x2000, scoped, tag = 'scratch operand']
  %s0 = inlined_call_operand.vmem [shape: bf16[16,32], index: 0, kind: input, shape index: {}]
  %s1 = inlined_call_operand.vmem [shape: bf16[32,96], index: 1, kind: input, shape index: {}]
  %s2 = inlined_call_operand.vmem [shape: f32[1,96], index: 2, kind: input, shape index: {}]
  %s3 = inlined_call_operand.vmem [shape: bf16[16,96], index: 3, kind: output, shape index: {}]
  %s4 = sld [smem:[#allocation0]]
  $region30: #{bert_forward.13} parent=0
    _
  %s6 = ssub.s32 1, %s4
  %s7 = scalar_select 0, %s6, %s4
  // Predicated region
  $region2: #{bert_forward.13} parent=0 // pred_check
    _
  $region3: #{bert_forward.13} parent=0 // pred_check_branch
    %9 = sbr.rel (0) target = $region5
  $region4: #{bert_forward.13} parent=0 // pred_region
    _
  $region5: #{bert_forward.13} parent=0 // pred_fallthru
    _
  // Predicated region
  $region6: #{bert_forward.13} parent=0 // pred_check
    _
  $region7: #{bert_forward.13} parent=0 // pred_check_branch
    %11 = sbr.rel (0) target = $region9
  $region8: #{bert_forward.13} parent=0 // pred_region
    _
  $region9: #{bert_forward.13} parent=0 // pred_fallthru
    _
  // Predicated region
  $region10: #{bert_forward.13} parent=0 // pred_check
    _
  $region11: #{bert_forward.13} parent=0 // pred_check_branch
    %13 = sbr.rel (0) target = $region13
  $region12: #{bert_forward.13} parent=0 // pred_region
    _
  $region13: #{bert_forward.13} parent=0 // pred_fallthru
    _
  %p15 = scmp.eq.s32.totalorder 0, 0
  // Predicated region
  $region14: #{bert_forward.13} parent=0 // pred_check
    %p16 = pneg %p15
  $region15: #{bert_forward.13} parent=0 // pred_check_branch
    %18 = sbr.rel (%p16) target = $region17
  $region16: #{bert_forward.13} parent=0 // pred_region
    %vm19 = vcmask 785408
    %20 = vst.msk [vmem:[#allocation2] sm:$0xff] %vm19, 0.0
    %21 = vst.msk [vmem:[#allocation2 + $0x8] sm:$0xff] %vm19, 0.0
  $region17: #{bert_forward.13} parent=0 // pred_fallthru
    _
  %v22 = vld [vmem:[#allocation2] sm:$0xff]
  %v23 = vld [vmem:[#allocation2 + $0x8] sm:$0xff]
  %v24 = vld [vmem:[%s0] sm:$0xf]
  %v25 = vld [vmem:[%s0 + $0x4] sm:$0xf]
  %v26 = vld [vmem:[%s1] sm:$0xf]
  %v27 = vld [vmem:[%s1 + $0x4] sm:$0xf]
  %v28 = vld [vmem:[%s1 + $0x8] sm:$0xf]
  %v29 = vld [vmem:[%s1 + $0xc] sm:$0xf]
  %v32 = vunpack.c.l.b16 %v24
  %v33 = vunpack.c.l.b16 %v25
  %v34 = vpack.c.b16 %v33, %v32
  %v39 = vunpack.c.l.b16 %v26
  %v40 = vunpack.c.l.b16 %v27
  %v41 = vunpack.c.l.b16 %v28
  %v42 = vunpack.c.l.b16 %v29
  %v43 = vpack.c.b16 %v40, %v39
  %v44 = vpack.c.b16 %v42, %v41
  %vm47 = vcmask 261120
  %v49 = vsel %vm47, %v34, 0
  %51 = vmatpush.bf16.msra.mxu0 0
  %52 = vmatpush.bf16.msra.mxu0 0
  %53 = vmatpush.bf16.msra.mxu0 0
  %54 = vmatpush.bf16.msra.mxu0 0
  %55 = vmatpush.bf16.msra.mxu0 0
  %56 = vmatpush.bf16.msra.mxu0 0
  %57 = vmatpush.bf16.msra.mxu0 %v44
  %58 = vmatpush.bf16.msra.mxu0 %v43
  %59 = vmatmul.bf16.gmra.mxu0 %v49
  %v60 = vpop.f32.mrf.mxu0
  %v61 = vadd.f32 0.0, %v60
  %v62 = vpop.f32.mrf.mxu0
  %v63 = vadd.f32 0.0, %v62
  %64 = vdwg.mxu0
  %v65 = vadd.f32 %v22, %v61
  %v66 = vadd.f32 %v23, %v63
  %vm67 = vcmask 785408
  %68 = vst.msk [vmem:[#allocation2] sm:$0xff] %vm67, %v65
  %69 = vst.msk [vmem:[#allocation2 + $0x8] sm:$0xff] %vm67, %v66
  // Predicated region
  $region18: #{bert_forward.13} parent=0 // pred_check
    %p70 = pneg %p15
  $region19: #{bert_forward.13} parent=0 // pred_check_branch
    %72 = sbr.rel (%p70) target = $region21
  $region20: #{bert_forward.13} parent=0 // pred_region
    %v73 = vld [vmem:[#allocation2] sm:$0xff]
    %v74 = vld [vmem:[#allocation2 + $0x8] sm:$0xff]
    %v75 = vld [vmem:[%s2] sm:$0x1]
    %v77 = vperm.slane %v75, 0
    %v79 = vadd.f32 %v73, %v77
    %v80 = vadd.f32 %v74, %v77
    %v81 = vpack.c.bf16 %v79, %v79
    %v82 = vpack.c.bf16 %v80, %v80
    %vm83 = vcmask 781312
    %84 = vst.msk [vmem:[%s3] sm:$0xf] %vm83, %v81
    %85 = vst.msk [vmem:[%s3 + $0x4] sm:$0xf] %vm83, %v82
  $region21: #{bert_forward.13} parent=0 // pred_fallthru
    _
  // Predicated region
  $region22: #{bert_forward.13} parent=0 // pred_check
    _
  $region23: #{bert_forward.13} parent=0 // pred_check_branch
    %87 = sbr.rel (0) target = $region25
  $region24: #{bert_forward.13} parent=0 // pred_region
    _
  $region25: #{bert_forward.13} parent=0 // pred_fallthru
    _
  // Predicated region
  $region26: #{bert_forward.13} parent=0 // pred_check
    _
  $region27: #{bert_forward.13} parent=0 // pred_check_branch
    %89 = sbr.rel (0) target = $region29
  $region28: #{bert_forward.13} parent=0 // pred_region
    _
  $region29: #{bert_forward.13} parent=0 // pred_fallthru
    _

// kernel: bert_forward.14
$region0: #{bert_forward.14}
  #allocation0 [shape = 'u32[]', space=smem, size = 0x4, offset = 0x4, fixed_abs, tag = 'smem constant byte address 0x4 - core index']
  #allocation1 [shape = 'u32[72,128]{1,0:T(1,128)}', space=vmem, size = 0x9000, scoped, tag = 'internal scratch']
  %s0 = inlined_call_operand.vmem [shape: bf16[2,8,96], index: 0, kind: input, shape index: {}]
  %s1 = inlined_call_operand.vmem [shape: bf16[2,8,32], index: 1, kind: output, shape index: {}]
  %s2 = sld [smem:[#allocation0]]
  $region37: #{bert_forward.14} parent=0
    _
  %s4 = ssub.s32 1, %s2
  %s5 = scalar_select 0, %s4, %s2
  loop: start=0, step=1, limit=4
  $region2: #{bert_forward.14} parent=0 // loop_pre_header
    _
  $region3: #{bert_forward.14} parent=0 // loop_header
    %s7 = sphi 0, %s11
    %p8 = scmp.ge.s32.totalorder %s7, 4
    %s17 = sphi 0, %s19
    %s20 = sphi 0, %s17
    %s21 = sphi 0, %s20
    %s37 = sphi 0, %s21
    %s43 = sphi 0, %s45
    %s46 = sphi 0, %s43
    %s47 = sphi 0, %s46
    %s63 = sphi 0, %s47
  $region4: #{bert_forward.14} parent=0 // loop_header_branch
    %10 = sbr.rel (%p8) target = $region8
  $region5: #{bert_forward.14} parent=0 // loop_body
    %s12 = ssub.s32 %s7, 1
    %s13 = ssub.s32 %s7, 2
    %s14 = sadd.s32 %s7, 1
    %s15 = ssub.s32 %s7, %s14
    %p16 = scmp.eq.s32.totalorder %s15, 0
    %s18 = sadd.s32 %s17, 1
    %s19 = scalar_select %p16, %s17, %s18
    %p22 = pneg %p16
    %p23 = scmp.eq.s32.totalorder %s7, 1
    %p24 = por %p22, %p23
    %p25 = scmp.ne.s32.totalorder %s17, %s20
    %p26 = scmp.eq.s32.totalorder %s7, 0
    %p27 = por %p25, %p26
    %p28 = scmp.ne.s32.totalorder %s17, %s20
    %p29 = scmp.eq.s32.totalorder %s12, 1
    %p30 = por %p28, %p29
    %p31 = scmp.ne.s32.totalorder %s20, %s21
    %p32 = scmp.eq.s32.totalorder %s12, 0
    %p33 = por %p31, %p32
    %p34 = scmp.ne.s32.totalorder %s20, %s21
    %p35 = scmp.eq.s32.totalorder %s13, 1
    %p36 = por %p34, %p35
    %p38 = scmp.ne.s32.totalorder %s21, %s37
    %p39 = scmp.eq.s32.totalorder %s13, 0
    %p40 = por %p38, %p39
    %s41 = ssub.s32 %s7, %s14
    %p42 = scmp.eq.s32.totalorder %s41, 0
    %s44 = sadd.s32 %s43, 1
    %s45 = scalar_select %p42, %s43, %s44
    %p48 = pneg %p42
    %p49 = scmp.eq.s32.totalorder %s7, 1
    %p50 = por %p48, %p49
    %p51 = scmp.ne.s32.totalorder %s43, %s46
    %p52 = scmp.eq.s32.totalorder %s7, 0
    %p53 = por %p51, %p52
    %p54 = scmp.ne.s32.totalorder %s43, %s46
    %p55 = scmp.eq.s32.totalorder %s12, 1
    %p56 = por %p54, %p55
    %p57 = scmp.ne.s32.totalorder %s46, %s47
    %p58 = scmp.eq.s32.totalorder %s12, 0
    %p59 = por %p57, %p58
    %p60 = scmp.ne.s32.totalorder %s46, %s47
    %p61 = scmp.eq.s32.totalorder %s13, 1
    %p62 = por %p60, %p61
    %p64 = scmp.ne.s32.totalorder %s47, %s63
    %p65 = scmp.eq.s32.totalorder %s13, 0
    %p66 = por %p64, %p65
    %p67 = scmp.le.s32.totalorder 1, %s7
    %p68 = scmp.lt.s32.totalorder %s7, 3
    %p69 = pnand %p67, %p68
    %p70 = pneg %p69
    // Predicated region
    $region9: #{bert_forward.14} parent=5 // pred_check
      _
    $region10: #{bert_forward.14} parent=5 // pred_check_branch
      %72 = sbr.rel (%p69) target = $region12
    $region11: #{bert_forward.14} parent=5 // pred_region
      %s73 = ssub.s32 %s7, 1
    $region12: #{bert_forward.14} parent=5 // pred_fallthru
      _
    %p74 = scmp.lt.s32.totalorder %s7, 2
    // Predicated region
    $region13: #{bert_forward.14} parent=5 // pred_check
      %p75 = pneg %p74
    $region14: #{bert_forward.14} parent=5 // pred_check_branch
      %77 = sbr.rel (%p75) target = $region16
    $region15: #{bert_forward.14} parent=5 // pred_region
      // Predicated region
      $region17: #{bert_forward.14} parent=15 // pred_check
        %p78 = pneg %p27
      $region18: #{bert_forward.14} parent=15 // pred_check_branch
        %80 = sbr.rel (%p78) target = $region20
      $region19: #{bert_forward.14} parent=15 // pred_region
        %p81 = scmp.lt.s32.totalorder %s7, 1
        %s82 = scalar_select %p81, %s7, 1
        %s83 = smul.addr %s82, 4
        %s84 = scalar_lea.vmem %s0, %s83
      $region20: #{bert_forward.14} parent=15 // pred_fallthru
        _
    $region16: #{bert_forward.14} parent=5 // pred_fallthru
      _
    %p85 = scmp.le.s32.totalorder 1, %s7
    %p86 = scmp.lt.s32.totalorder %s7, 3
    %p87 = pnand %p85, %p86
    %p88 = pneg %p87
    // Predicated region
    $region21: #{bert_forward.14} parent=5 // pred_check
      _
    $region22: #{bert_forward.14} parent=5 // pred_check_branch
      %90 = sbr.rel (%p87) target = $region24
    $region23: #{bert_forward.14} parent=5 // pred_region
      %s91 = ssub.s32 %s7, 1
      %p92 = scmp.lt.s32.totalorder %s12, 1
      %s93 = scalar_select %p92, %s12, 1
      %s94 = smul.addr %s93, 4
      %s95 = scalar_lea.vmem %s0, %s94
      %p96 = pneg %p33
      %p97 = pneg %p30
      %p98 = pneg %p59
      %p99 = pneg %p56
      %p100 = scmp.lt.s32.totalorder %s12, 1
      %s101 = scalar_select %p100, %s12, 1
      %s102 = smul.addr %s101, 4
      %s103 = scalar_lea.vmem %s1, %s102
      %p104 = scmp.lt.s32.totalorder %s12, 1
      %s105 = scalar_select %p104, %s12, 1
      %s106 = smul.addr %s105, 4
      %s107 = scalar_lea.vmem %s0, %s106
      %p108 = scmp.lt.s32.totalorder %s12, 1
      %s109 = scalar_select %p108, %s12, 1
      %s110 = smul.addr %s109, 4
      %s111 = scalar_lea.vmem %s1, %s110
      %v113 = vld [vmem:[%s107] sm:$0xf]
      %v115 = vunpack.c.l.b16 %v113
      %v116 = vpack.c.b16 %v115, %v115
      %117 = vrot.lane.b32.xlu0 %v116, 96
      %v118 = vpop.permute.xlu0 %117
      %vm119 = vcmask 64512
      %v121 = vsel %vm119, %v113, 0
      %v124 = vsel %vm119, %v118, 0
      %126 = vmatpush.bf16.xpose.msra.mxu0 0
      %127 = vmatpush.bf16.xpose.msra.mxu0 0
      %128 = vmatpush.bf16.xpose.msra.mxu0 0
      %129 = vmatpush.bf16.xpose.msra.mxu0 0
      %130 = vmatpush.bf16.xpose.msra.mxu0 0
      %131 = vmatpush.bf16.xpose.msra.mxu0 0
      %132 = vmatpush.bf16.xpose.msra.mxu0 0
      %133 = vmatpush.bf16.xpose.msra.mxu0 %v124
      %134 = vmatmul.bf16.gmra.mxu0 %v121
      %v135 = vpop.f32.mrf.mxu0
      %v136 = vadd.f32 0.0, %v135
      %v137 = vpop.f32.mrf.mxu0
      %138 = vdwg.mxu0
      %v139 = vmul.f32 %v136, 0.35355338
      %v140 = vsel %vm119, %v139, -inf
      %141 = vmax.xlane.f32.xlu0 %v140
      %v142 = vpop.xlane.xlu0 %141
      %v143 = vsub.f32 %v139, %v142
      %v144 = vmul.f32 %v143, 1.442695
      %v145 = vpow.pop %v144
      %v146 = vsel %vm119, %v145, 0.0
      %147 = vadd.xlane.f32.xlu0 %v146
      %v148 = vpop.xlane.xlu0 %147
      %v149 = vrcp.pop %v148
      %v150 = vmul.f32 %v145, %v149
      %v151 = vpack.c.bf16 %v150, %v150
      %152 = vrot.lane.b32.xlu0 %v116, 64
      %v153 = vpop.permute.xlu0 %152
      %v155 = vsel %vm119, %v151, 0
      %vm157 = vcmask 1043456
      %v159 = vsel %vm157, %v153, 0
      %161 = vmatpush.bf16.msra.mxu0 0
      %162 = vmatpush.bf16.msra.mxu0 0
      %163 = vmatpush.bf16.msra.mxu0 0
      %164 = vmatpush.bf16.msra.mxu0 0
      %165 = vmatpush.bf16.msra.mxu0 0
      %166 = vmatpush.bf16.msra.mxu0 0
      %167 = vmatpush.bf16.msra.mxu0 0
      %168 = vmatpush.bf16.msra.mxu0 %v159
      %169 = vmatmul.bf16.gmra.mxu0 %v155
      %v170 = vpop.f32.mrf.mxu0
      %v171 = vadd.f32 0.0, %v170
      %v172 = vpop.f32.mrf.mxu0
      %173 = vdwg.mxu0
      %174 = vrot.lane.b32.xlu0 %v116, 120
      %v175 = vpop.permute.xlu0 %174
      %176 = vrot.lane.b32.xlu0 %v116, 88
      %v177 = vpop.permute.xlu0 %176
      %v179 = vsel %vm119, %v175, 0
      %v182 = vsel %vm119, %v177, 0
      %184 = vmatpush.bf16.xpose.msra.mxu0 0
      %185 = vmatpush.bf16.xpose.msra.mxu0 0
      %186 = vmatpush.bf16.xpose.msra.mxu0 0
      %187 = vmatpush.bf16.xpose.msra.mxu0 0
      %188 = vmatpush.bf16.xpose.msra.mxu0 0
      %189 = vmatpush.bf16.xpose.msra.mxu0 0
      %190 = vmatpush.bf16.xpose.msra.mxu0 0
      %191 = vmatpush.bf16.xpose.msra.mxu0 %v182
      %192 = vmatmul.bf16.gmra.mxu0 %v179
      %v193 = vpop.f32.mrf.mxu0
      %v194 = vadd.f32 0.0, %v193
      %v195 = vpop.f32.mrf.mxu0
      %196 = vdwg.mxu0
      %v197 = vmul.f32 %v194, 0.35355338
      %v198 = vsel %vm119, %v197, -inf
      %199 = vmax.xlane.f32.xlu0 %v198
      %v200 = vpop.xlane.xlu0 %199
      %v201 = vsub.f32 %v197, %v200
      %v202 = vmul.f32 %v201, 1.442695
      %v203 = vpow.pop %v202
      %v204 = vsel %vm119, %v203, 0.0
      %205 = vadd.xlane.f32.xlu0 %v204
      %v206 = vpop.xlane.xlu0 %205
      %v207 = vrcp.pop %v206
      %v208 = vmul.f32 %v203, %v207
      %v209 = vpack.c.bf16 %v208, %v208
      %210 = vrot.lane.b32.xlu0 %v116, 56
      %v211 = vpop.permute.xlu0 %210
      %v213 = vsel %vm119, %v209, 0
      %v216 = vsel %vm157, %v211, 0
      %218 = vmatpush.bf16.msra.mxu0 0
      %219 = vmatpush.bf16.msra.mxu0 0
      %220 = vmatpush.bf16.msra.mxu0 0
      %221 = vmatpush.bf16.msra.mxu0 0
      %222 = vmatpush.bf16.msra.mxu0 0
      %223 = vmatpush.bf16.msra.mxu0 0
      %224 = vmatpush.bf16.msra.mxu0 0
      %225 = vmatpush.bf16.msra.mxu0 %v216
      %226 = vmatmul.bf16.gmra.mxu0 %v213
      %v227 = vpop.f32.mrf.mxu0
      %v228 = vadd.f32 0.0, %v227
      %v229 = vpop.f32.mrf.mxu0
      %230 = vdwg.mxu0
      %231 = vrot.lane.b32.xlu0 %v116, 112
      %v232 = vpop.permute.xlu0 %231
      %233 = vrot.lane.b32.xlu0 %v116, 80
      %v234 = vpop.permute.xlu0 %233
      %v236 = vsel %vm119, %v232, 0
      %v239 = vsel %vm119, %v234, 0
      %241 = vmatpush.bf16.xpose.msra.mxu0 0
      %242 = vmatpush.bf16.xpose.msra.mxu0 0
      %243 = vmatpush.bf16.xpose.msra.mxu0 0
      %244 = vmatpush.bf16.xpose.msra.mxu0 0
      %245 = vmatpush.bf16.xpose.msra.mxu0 0
      %246 = vmatpush.bf16.xpose.msra.mxu0 0
      %247 = vmatpush.bf16.xpose.msra.mxu0 0
      %248 = vmatpush.bf16.xpose.msra.mxu0 %v239
      %249 = vmatmul.bf16.gmra.mxu0 %v236
      %v250 = vpop.f32.mrf.mxu0
      %v251 = vadd.f32 0.0, %v250
      %v252 = vpop.f32.mrf.mxu0
      %253 = vdwg.mxu0
      %v254 = vmul.f32 %v251, 0.35355338
      %v255 = vsel %vm119, %v254, -inf
      %256 = vmax.xlane.f32.xlu0 %v255
      %v257 = vpop.xlane.xlu0 %256
      %v258 = vsub.f32 %v254, %v257
      %v259 = vmul.f32 %v258, 1.442695
      %v260 = vpow.pop %v259
      %v261 = vsel %vm119, %v260, 0.0
      %262 = vadd.xlane.f32.xlu0 %v261
      %v263 = vpop.xlane.xlu0 %262
      %v264 = vrcp.pop %v263
      %v265 = vmul.f32 %v260, %v264
      %v266 = vpack.c.bf16 %v265, %v265
      %267 = vrot.lane.b32.xlu0 %v116, 48
      %v268 = vpop.permute.xlu0 %267
      %v270 = vsel %vm119, %v266, 0
      %v273 = vsel %vm157, %v268, 0
      %275 = vmatpush.bf16.msra.mxu0 0
      %276 = vmatpush.bf16.msra.mxu0 0
      %277 = vmatpush.bf16.msra.mxu0 0
      %278 = vmatpush.bf16.msra.mxu0 0
      %279 = vmatpush.bf16.msra.mxu0 0
      %280 = vmatpush.bf16.msra.mxu0 0
      %281 = vmatpush.bf16.msra.mxu0 0
      %282 = vmatpush.bf16.msra.mxu0 %v273
      %283 = vmatmul.bf16.gmra.mxu0 %v270
      %v284 = vpop.f32.mrf.mxu0
      %v285 = vadd.f32 0.0, %v284
      %v286 = vpop.f32.mrf.mxu0
      %287 = vdwg.mxu0
      %288 = vrot.lane.b32.xlu0 %v116, 104
      %v289 = vpop.permute.xlu0 %288
      %290 = vrot.lane.b32.xlu0 %v116, 72
      %v291 = vpop.permute.xlu0 %290
      %v293 = vsel %vm119, %v289, 0
      %v296 = vsel %vm119, %v291, 0
      %298 = vmatpush.bf16.xpose.msra.mxu0 0
      %299 = vmatpush.bf16.xpose.msra.mxu0 0
      %300 = vmatpush.bf16.xpose.msra.mxu0 0
      %301 = vmatpush.bf16.xpose.msra.mxu0 0
      %302 = vmatpush.bf16.xpose.msra.mxu0 0
      %303 = vmatpush.bf16.xpose.msra.mxu0 0
      %304 = vmatpush.bf16.xpose.msra.mxu0 0
      %305 = vmatpush.bf16.xpose.msra.mxu0 %v296
      %306 = vmatmul.bf16.gmra.mxu0 %v293
      %v307 = vpop.f32.mrf.mxu0
      %v308 = vadd.f32 0.0, %v307
      %v309 = vpop.f32.mrf.mxu0
      %310 = vdwg.mxu0
      %v311 = vmul.f32 %v308, 0.35355338
      %v312 = vsel %vm119, %v311, -inf
      %313 = vmax.xlane.f32.xlu0 %v312
      %v314 = vpop.xlane.xlu0 %313
      %v315 = vsub.f32 %v311, %v314
      %v316 = vmul.f32 %v315, 1.442695
      %v317 = vpow.pop %v316
      %v318 = vsel %vm119, %v317, 0.0
      %319 = vadd.xlane.f32.xlu0 %v318
      %v320 = vpop.xlane.xlu0 %319
      %v321 = vrcp.pop %v320
      %v322 = vmul.f32 %v317, %v321
      %v323 = vpack.c.bf16 %v322, %v322
      %324 = vrot.lane.b32.xlu0 %v116, 40
      %v325 = vpop.permute.xlu0 %324
      %v327 = vsel %vm119, %v323, 0
      %v330 = vsel %vm157, %v325, 0
      %332 = vmatpush.bf16.msra.mxu0 0
      %333 = vmatpush.bf16.msra.mxu0 0
      %334 = vmatpush.bf16.msra.mxu0 0
      %335 = vmatpush.bf16.msra.mxu0 0
      %336 = vmatpush.bf16.msra.mxu0 0
      %337 = vmatpush.bf16.msra.mxu0 0
      %338 = vmatpush.bf16.msra.mxu0 0
      %339 = vmatpush.bf16.msra.mxu0 %v330
      %340 = vmatmul.bf16.gmra.mxu0 %v327
      %v341 = vpop.f32.mrf.mxu0
      %v342 = vadd.f32 0.0, %v341
      %v343 = vpop.f32.mrf.mxu0
      %344 = vdwg.mxu0
      %346 = vrot.lane.b32.xlu0 %v228, 8
      %v347 = vpop.permute.xlu0 %346
      %350 = vrot.lane.b32.xlu0 %v285, 16
      %v351 = vpop.permute.xlu0 %350
      %354 = vrot.lane.b32.xlu0 %v342, 24
      %v355 = vpop.permute.xlu0 %354
      %v357 = vsel %vm119, %v171, %v347
      %vm358 = vcmask 130048
      %v359 = vsel %vm358, %v357, %v351
      %vm360 = vcmask 195584
      %v361 = vsel %vm360, %v359, %v355
      %v362 = vpack.c.bf16 %v361, %v361
      %vm363 = vcmask 257024
      %364 = vst.msk [vmem:[%s111] sm:$0xf] %vm363, %v362
      %p365 = scmp.lt.s32.totalorder %s12, 1
      %s366 = scalar_select %p365, %s12, 1
      %s367 = smul.addr %s366, 4
      %s368 = scalar_lea.vmem %s1, %s367
      // Predicated region
      $region25: #{bert_forward.14} parent=23 // pred_check
        %p369 = pneg %p56
      $region26: #{bert_forward.14} parent=23 // pred_check_branch
        %371 = sbr.rel (%p369) target = $region28
      $region27: #{bert_forward.14} parent=23 // pred_region
        _
      $region28: #{bert_forward.14} parent=23 // pred_fallthru
        _
    $region24: #{bert_forward.14} parent=5 // pred_fallthru
      _
    %p372 = scmp.le.s32.totalorder 2, %s7
    // Predicated region
    $region29: #{bert_forward.14} parent=5 // pred_check
      %p373 = pneg %p372
    $region30: #{bert_forward.14} parent=5 // pred_check_branch
      %375 = sbr.rel (%p373) target = $region32
    $region31: #{bert_forward.14} parent=5 // pred_region
      %s376 = ssub.s32 %s7, 2
      // Predicated region
      $region33: #{bert_forward.14} parent=31 // pred_check
        %p377 = pneg %p62
      $region34: #{bert_forward.14} parent=31 // pred_check_branch
        %379 = sbr.rel (%p377) target = $region36
      $region35: #{bert_forward.14} parent=31 // pred_region
        %p380 = scmp.lt.s32.totalorder %s13, 1
        %s381 = scalar_select %p380, %s13, 1
        %s382 = smul.addr %s381, 4
        %s383 = scalar_lea.vmem %s1, %s382
      $region36: #{bert_forward.14} parent=31 // pred_fallthru
        _
    $region32: #{bert_forward.14} parent=5 // pred_fallthru
      _
  $region6: #{bert_forward.14} parent=0 // loop_footer
    %s11 = sadd.s32 1, %s7
  $region7: #{bert_forward.14} parent=0 // loop_footer_branch
    %6 = sbr.rel target = $region3
  $region8: #{bert_forward.14} parent=0 // loop_exit
    _

// kernel: bert_forward.12
$region0: #{bert_forward.12}
  #allocation0 [shape = 'u32[]', space=smem, size = 0x4, offset = 0x4, fixed_abs, tag = 'smem constant byte address 0x4 - core index']
  #allocation1 [shape = 'u32[72,128]{1,0:T(1,128)}', space=vmem, size = 0x9000, scoped, tag = 'internal scratch']
  %s0 = inlined_call_operand.vmem [shape: bf16[16,32], index: 0, kind: input, shape index: {}]
  %s1 = inlined_call_operand.vmem [shape: bf16[16,32], index: 1, kind: input, shape index: {}]
  %s2 = inlined_call_operand.vmem [shape: f32[1,32], index: 2, kind: input, shape index: {}]
  %s3 = inlined_call_operand.vmem [shape: f32[1,32], index: 3, kind: input, shape index: {}]
  %s4 = inlined_call_operand.vmem [shape: bf16[16,32], index: 4, kind: output, shape index: {}]
  %s5 = sld [smem:[#allocation0]]
  $region26: #{bert_forward.12} parent=0
    _
  %s7 = ssub.s32 1, %s5
  %s8 = scalar_select 0, %s7, %s5
  // Predicated region
  $region2: #{bert_forward.12} parent=0 // pred_check
    _
  $region3: #{bert_forward.12} parent=0 // pred_check_branch
    %10 = sbr.rel (0) target = $region5
  $region4: #{bert_forward.12} parent=0 // pred_region
    _
  $region5: #{bert_forward.12} parent=0 // pred_fallthru
    _
  // Predicated region
  $region6: #{bert_forward.12} parent=0 // pred_check
    _
  $region7: #{bert_forward.12} parent=0 // pred_check_branch
    %12 = sbr.rel (0) target = $region9
  $region8: #{bert_forward.12} parent=0 // pred_region
    _
  $region9: #{bert_forward.12} parent=0 // pred_fallthru
    _
  // Predicated region
  $region10: #{bert_forward.12} parent=0 // pred_check
    _
  $region11: #{bert_forward.12} parent=0 // pred_check_branch
    %14 = sbr.rel (0) target = $region13
  $region12: #{bert_forward.12} parent=0 // pred_region
    _
  $region13: #{bert_forward.12} parent=0 // pred_fallthru
    _
  // Predicated region
  $region14: #{bert_forward.12} parent=0 // pred_check
    _
  $region15: #{bert_forward.12} parent=0 // pred_check_branch
    %16 = sbr.rel (0) target = $region17
  $region16: #{bert_forward.12} parent=0 // pred_region
    _
  $region17: #{bert_forward.12} parent=0 // pred_fallthru
    _
  %v17 = vld [vmem:[%s0] sm:$0xf]
  %v18 = vld [vmem:[%s0 + $0x4] sm:$0xf]
  %v19 = vunpack.c.l.bf16 %v17
  %v20 = vunpack.c.l.bf16 %v18
  %v21 = vld [vmem:[%s1] sm:$0xf]
  %v22 = vld [vmem:[%s1 + $0x4] sm:$0xf]
  %v23 = vunpack.c.l.bf16 %v21
  %v24 = vunpack.c.l.bf16 %v22
  %v25 = vadd.f32 %v19, %v23
  %v26 = vadd.f32 %v20, %v24
  %vm27 = vcmask 261120
  %v28 = vsel %vm27, %v25, 0.0
  %29 = vadd.xlane.f32.xlu0 %v28
  %v30 = vpop.xlane.xlu0 %29
  %v31 = vsel %vm27, %v26, 0.0
  %32 = vadd.xlane.f32.xlu0 %v31
  %v33 = vpop.xlane.xlu0 %32
  %v34 = vrcp.pop 32.0
  %v35 = vmul.f32 32.0, %v34
  %v36 = vsub.f32 1.0, %v35
  %v37 = vmul.f32 %v34, %v36
  %v38 = vadd.f32 %v34, %v37
  %vm39 = vweird.f32 %v34
  %v40 = vsel %vm39, %v34, %v38
  %v41 = vmul.f32 %v30, %v40
  %v42 = vmul.f32 %v33, %v40
  %v43 = vsub.f32 %v25, %v41
  %v44 = vsub.f32 %v26, %v42
  %v45 = vmul.f32 %v43, %v43
  %v46 = vmul.f32 %v44, %v44
  %v47 = vsel %vm27, %v45, 0.0
  %48 = vadd.xlane.f32.xlu0 %v47
  %v49 = vpop.xlane.xlu0 %48
  %v50 = vsel %vm27, %v46, 0.0
  %51 = vadd.xlane.f32.xlu0 %v50
  %v52 = vpop.xlane.xlu0 %51
  %v53 = vmul.f32 %v49, %v40
  %v54 = vmul.f32 %v52, %v40
  %v55 = vadd.f32 %v53, 1e-05
  %v56 = vadd.f32 %v54, 1e-05
  %v57 = vrsqrt.pop %v55
  %v58 = vmul.f32 %v57, %v55
  %v59 = vmul.f32 %v58, %v57
  %v60 = vmul.f32 0.5, %v59
  %v61 = vsub.f32 1.5, %v60
  %v62 = vmul.f32 %v57, %v61
  %vm63 = vweird.f32 %v55
  %vm64 = vweird.f32 %v57
  %vm65 = vmor %vm63, %vm64
  %v66 = vsel %vm65, %v57, %v62
  %v67 = vrsqrt.pop %v56
  %v68 = vmul.f32 %v67, %v56
  %v69 = vmul.f32 %v68, %v67
  %v70 = vmul.f32 0.5, %v69
  %v71 = vsub.f32 1.5, %v70
  %v72 = vmul.f32 %v67, %v71
  %vm73 = vweird.f32 %v56
  %vm74 = vweird.f32 %v67
  %vm75 = vmor %vm73, %vm74
  %v76 = vsel %vm75, %v67, %v72
  %v77 = vmul.f32 %v43, %v66
  %v78 = vmul.f32 %v44, %v76
  %v79 = vld [vmem:[%s2] sm:$0x1]
  %v81 = vperm.slane %v79, 0
  %v83 = vmul.f32 %v77, %v81
  %v84 = vmul.f32 %v78, %v81
  %v85 = vld [vmem:[%s3] sm:$0x1]
  %v87 = vperm.slane %v85, 0
  %v89 = vadd.f32 %v83, %v87
  %v90 = vadd.f32 %v84, %v87
  %v91 = vpack.c.bf16 %v89, %v89
  %v92 = vpack.c.bf16 %v90, %v90
  %vm93 = vcmask 257024
  %94 = vst.msk [vmem:[%s4] sm:$0xf] %vm93, %v91
  %95 = vst.msk [vmem:[%s4 + $0x4] sm:$0xf] %vm93, %v92
  // Predicated region
  $region18: #{bert_forward.12} parent=0 // pred_check
    _
  $region19: #{bert_forward.12} parent=0 // pred_check_branch
    %97 = sbr.rel (0) target = $region21
  $region20: #{bert_forward.12} parent=0 // pred_region
    _
  $region21: #{bert_forward.12} parent=0 // pred_fallthru
    _
  // Predicated region
  $region22: #{bert_forward.12} parent=0 // pred_check
    _
  $region23: #{bert_forward.12} parent=0 // pred_check_branch
    %99 = sbr.rel (0) target = $region25
  $region24: #{bert_forward.12} parent=0 // pred_region
    _
  $region25: #{bert_forward.12} parent=0 // pred_fallthru
    _

// kernel: bert_forward.17
$region0: #{bert_forward.17}
  #allocation0 [shape = 'u32[]', space=smem, size = 0x4, offset = 0x4, fixed_abs, tag = 'smem constant byte address 0x4 - core index']
  #allocation1 [shape = 'u32[72,128]{1,0:T(1,128)}', space=vmem, size = 0x9000, scoped, tag = 'internal scratch']
  #allocation2 [shape = 'f32[16,32]{1,0:T(8,128)}', space=vmem, size = 0x2000, scoped, tag = 'scratch operand']
  %s0 = inlined_call_operand.vmem [shape: bf16[16,128], index: 0, kind: input, shape index: {}]
  %s1 = inlined_call_operand.vmem [shape: bf16[128,32], index: 1, kind: input, shape index: {}]
  %s2 = inlined_call_operand.vmem [shape: f32[1,32], index: 2, kind: input, shape index: {}]
  %s3 = inlined_call_operand.vmem [shape: bf16[16,32], index: 3, kind: input, shape index: {}]
  %s4 = inlined_call_operand.vmem [shape: f32[1,32], index: 4, kind: input, shape index: {}]
  %s5 = inlined_call_operand.vmem [shape: f32[1,32], index: 5, kind: input, shape index: {}]
  %s6 = inlined_call_operand.vmem [shape: bf16[16,32], index: 6, kind: output, shape index: {}]
  %s7 = sld [smem:[#allocation0]]
  $region42: #{bert_forward.17} parent=0
    _
  %s9 = ssub.s32 1, %s7
  %s10 = scalar_select 0, %s9, %s7
  // Predicated region
  $region2: #{bert_forward.17} parent=0 // pred_check
    _
  $region3: #{bert_forward.17} parent=0 // pred_check_branch
    %12 = sbr.rel (0) target = $region5
  $region4: #{bert_forward.17} parent=0 // pred_region
    _
  $region5: #{bert_forward.17} parent=0 // pred_fallthru
    _
  // Predicated region
  $region6: #{bert_forward.17} parent=0 // pred_check
    _
  $region7: #{bert_forward.17} parent=0 // pred_check_branch
    %14 = sbr.rel (0) target = $region9
  $region8: #{bert_forward.17} parent=0 // pred_region
    _
  $region9: #{bert_forward.17} parent=0 // pred_fallthru
    _
  // Predicated region
  $region10: #{bert_forward.17} parent=0 // pred_check
    _
  $region11: #{bert_forward.17} parent=0 // pred_check_branch
    %16 = sbr.rel (0) target = $region13
  $region12: #{bert_forward.17} parent=0 // pred_region
    _
  $region13: #{bert_forward.17} parent=0 // pred_fallthru
    _
  // Predicated region
  $region14: #{bert_forward.17} parent=0 // pred_check
    _
  $region15: #{bert_forward.17} parent=0 // pred_check_branch
    %18 = sbr.rel (0) target = $region17
  $region16: #{bert_forward.17} parent=0 // pred_region
    _
  $region17: #{bert_forward.17} parent=0 // pred_fallthru
    _
  // Predicated region
  $region18: #{bert_forward.17} parent=0 // pred_check
    _
  $region19: #{bert_forward.17} parent=0 // pred_check_branch
    %20 = sbr.rel (0) target = $region21
  $region20: #{bert_forward.17} parent=0 // pred_region
    _
  $region21: #{bert_forward.17} parent=0 // pred_fallthru
    _
  // Predicated region
  $region22: #{bert_forward.17} parent=0 // pred_check
    _
  $region23: #{bert_forward.17} parent=0 // pred_check_branch
    %22 = sbr.rel (0) target = $region25
  $region24: #{bert_forward.17} parent=0 // pred_region
    _
  $region25: #{bert_forward.17} parent=0 // pred_fallthru
    _
  %p23 = scmp.eq.s32.totalorder 0, 0
  // Predicated region
  $region26: #{bert_forward.17} parent=0 // pred_check
    %p24 = pneg %p23
  $region27: #{bert_forward.17} parent=0 // pred_check_branch
    %26 = sbr.rel (%p24) target = $region29
  $region28: #{bert_forward.17} parent=0 // pred_region
    %vm27 = vcmask 261120
    %28 = vst.msk [vmem:[#allocation2] sm:$0xff] %vm27, 0.0
    %29 = vst.msk [vmem:[#allocation2 + $0x8] sm:$0xff] %vm27, 0.0
  $region29: #{bert_forward.17} parent=0 // pred_fallthru
    _
  %v30 = vld [vmem:[#allocation2] sm:$0xff]
  %v31 = vld [vmem:[#allocation2 + $0x8] sm:$0xff]
  %v32 = vld [vmem:[%s0] sm:$0xf]
  %v33 = vld [vmem:[%s0 + $0x4] sm:$0xf]
  %v34 = vld [vmem:[%s1] sm:$0xf]
  %v35 = vld [vmem:[%s1 + $0x4] sm:$0xf]
  %v36 = vld [vmem:[%s1 + $0x8] sm:$0xf]
  %v37 = vld [vmem:[%s1 + $0xc] sm:$0xf]
  %v38 = vld [vmem:[%s1 + $0x10] sm:$0xf]
  %v39 = vld [vmem:[%s1 + $0x14] sm:$0xf]
  %v40 = vld [vmem:[%s1 + $0x18] sm:$0xf]
  %v41 = vld [vmem:[%s1 + $0x1c] sm:$0xf]
  %v42 = vld [vmem:[%s1 + $0x20] sm:$0xf]
  %v43 = vld [vmem:[%s1 + $0x24] sm:$0xf]
  %v44 = vld [vmem:[%s1 + $0x28] sm:$0xf]
  %v45 = vld [vmem:[%s1 + $0x2c] sm:$0xf]
  %v46 = vld [vmem:[%s1 + $0x30] sm:$0xf]
  %v47 = vld [vmem:[%s1 + $0x34] sm:$0xf]
  %v48 = vld [vmem:[%s1 + $0x38] sm:$0xf]
  %v49 = vld [vmem:[%s1 + $0x3c] sm:$0xf]
  %v52 = vunpack.c.l.b16 %v32
  %v53 = vunpack.c.l.b16 %v33
  %v54 = vpack.c.b16 %v53, %v52
  %v72 = vunpack.c.l.b16 %v34
  %v73 = vunpack.c.l.b16 %v35
  %v74 = vunpack.c.l.b16 %v36
  %v75 = vunpack.c.l.b16 %v37
  %v76 = vunpack.c.l.b16 %v38
  %v77 = vunpack.c.l.b16 %v39
  %v78 = vunpack.c.l.b16 %v40
  %v79 = vunpack.c.l.b16 %v41
  %v80 = vunpack.c.l.b16 %v42
  %v81 = vunpack.c.l.b16 %v43
  %v82 = vunpack.c.l.b16 %v44
  %v83 = vunpack.c.l.b16 %v45
  %v84 = vunpack.c.l.b16 %v46
  %v85 = vunpack.c.l.b16 %v47
  %v86 = vunpack.c.l.b16 %v48
  %v87 = vunpack.c.l.b16 %v49
  %v88 = vpack.c.b16 %v73, %v72
  %v89 = vpack.c.b16 %v75, %v74
  %v90 = vpack.c.b16 %v77, %v76
  %v91 = vpack.c.b16 %v79, %v78
  %v92 = vpack.c.b16 %v81, %v80
  %v93 = vpack.c.b16 %v83, %v82
  %v94 = vpack.c.b16 %v85, %v84
  %v95 = vpack.c.b16 %v87, %v86
  %104 = vmatpush.bf16.msra.mxu0 %v95
  %105 = vmatpush.bf16.msra.mxu0 %v94
  %106 = vmatpush.bf16.msra.mxu0 %v93
  %107 = vmatpush.bf16.msra.mxu0 %v92
  %108 = vmatpush.bf16.msra.mxu0 %v91
  %109 = vmatpush.bf16.msra.mxu0 %v90
  %110 = vmatpush.bf16.msra.mxu0 %v89
  %111 = vmatpush.bf16.msra.mxu0 %v88
  %112 = vmatmul.bf16.gmra.mxu0 %v54
  %v113 = vpop.f32.mrf.mxu0
  %v114 = vadd.f32 0.0, %v113
  %v115 = vpop.f32.mrf.mxu0
  %v116 = vadd.f32 0.0, %v115
  %117 = vdwg.mxu0
  %v118 = vadd.f32 %v30, %v114
  %v119 = vadd.f32 %v31, %v116
  %vm120 = vcmask 261120
  %121 = vst.msk [vmem:[#allocation2] sm:$0xff] %vm120, %v118
  %122 = vst.msk [vmem:[#allocation2 + $0x8] sm:$0xff] %vm120, %v119
  // Predicated region
  $region30: #{bert_forward.17} parent=0 // pred_check
    %p123 = pneg %p23
  $region31: #{bert_forward.17} parent=0 // pred_check_branch
    %125 = sbr.rel (%p123) target = $region33
  $region32: #{bert_forward.17} parent=0 // pred_region
    %v126 = vld [vmem:[#allocation2] sm:$0xff]
    %v127 = vld [vmem:[#allocation2 + $0x8] sm:$0xff]
    %v128 = vld [vmem:[%s2] sm:$0x1]
    %v130 = vperm.slane %v128, 0
    %v132 = vadd.f32 %v126, %v130
    %v133 = vadd.f32 %v127, %v130
    %v134 = vld [vmem:[%s3] sm:$0xf]
    %v135 = vld [vmem:[%s3 + $0x4] sm:$0xf]
    %v136 = vunpack.c.l.bf16 %v134
    %v137 = vunpack.c.l.bf16 %v135
    %v138 = vadd.f32 %v132, %v136
    %v139 = vadd.f32 %v133, %v137
    %v140 = vsel %vm120, %v138, 0.0
    %141 = vadd.xlane.f32.xlu0 %v140
    %v142 = vpop.xlane.xlu0 %141
    %v143 = vsel %vm120, %v139, 0.0
    %144 = vadd.xlane.f32.xlu0 %v143
    %v145 = vpop.xlane.xlu0 %144
    %v146 = vrcp.pop 32.0
    %v147 = vmul.f32 32.0, %v146
    %v148 = vsub.f32 1.0, %v147
    %v149 = vmul.f32 %v146, %v148
    %v150 = vadd.f32 %v146, %v149
    %vm151 = vweird.f32 %v146
    %v152 = vsel %vm151, %v146, %v150
    %v153 = vmul.f32 %v142, %v152
    %v154 = vmul.f32 %v145, %v152
    %v155 = vsub.f32 %v138, %v153
    %v156 = vsub.f32 %v139, %v154
    %v157 = vmul.f32 %v155, %v155
    %v158 = vmul.f32 %v156, %v156
    %v159 = vsel %vm120, %v157, 0.0
    %160 = vadd.xlane.f32.xlu0 %v159
    %v161 = vpop.xlane.xlu0 %160
    %v162 = vsel %vm120, %v158, 0.0
    %163 = vadd.xlane.f32.xlu0 %v162
    %v164 = vpop.xlane.xlu0 %163
    %v165 = vmul.f32 %v161, %v152
    %v166 = vmul.f32 %v164, %v152
    %v167 = vadd.f32 %v165, 1e-05
    %v168 = vadd.f32 %v166, 1e-05
    %v169 = vrsqrt.pop %v167
    %v170 = vmul.f32 %v169, %v167
    %v171 = vmul.f32 %v170, %v169
    %v172 = vmul.f32 0.5, %v171
    %v173 = vsub.f32 1.5, %v172
    %v174 = vmul.f32 %v169, %v173
    %vm175 = vweird.f32 %v167
    %vm176 = vweird.f32 %v169
    %vm177 = vmor %vm175, %vm176
    %v178 = vsel %vm177, %v169, %v174
    %v179 = vrsqrt.pop %v168
    %v180 = vmul.f32 %v179, %v168
    %v181 = vmul.f32 %v180, %v179
    %v182 = vmul.f32 0.5, %v181
    %v183 = vsub.f32 1.5, %v182
    %v184 = vmul.f32 %v179, %v183
    %vm185 = vweird.f32 %v168
    %vm186 = vweird.f32 %v179
    %vm187 = vmor %vm185, %vm186
    %v188 = vsel %vm187, %v179, %v184
    %v189 = vmul.f32 %v155, %v178
    %v190 = vmul.f32 %v156, %v188
    %v191 = vld [vmem:[%s4] sm:$0x1]
    %v193 = vperm.slane %v191, 0
    %v195 = vmul.f32 %v189, %v193
    %v196 = vmul.f32 %v190, %v193
    %v197 = vld [vmem:[%s5] sm:$0x1]
    %v199 = vperm.slane %v197, 0
    %v201 = vadd.f32 %v195, %v199
    %v202 = vadd.f32 %v196, %v199
    %v203 = vpack.c.bf16 %v201, %v201
    %v204 = vpack.c.bf16 %v202, %v202
    %vm205 = vcmask 257024
    %206 = vst.msk [vmem:[%s6] sm:$0xf] %vm205, %v203
    %207 = vst.msk [vmem:[%s6 + $0x4] sm:$0xf] %vm205, %v204
  $region33: #{bert_forward.17} parent=0 // pred_fallthru
    _
  // Predicated region
  $region34: #{bert_forward.17} parent=0 // pred_check
    _
  $region35: #{bert_forward.17} parent=0 // pred_check_branch
    %209 = sbr.rel (0) target = $region37
  $region36: #{bert_forward.17} parent=0 // pred_region
    _
  $region37: #{bert_forward.17} parent=0 // pred_fallthru
    _
  // Predicated region
  $region38: #{bert_forward.17} parent=0 // pred_check
    _
  $region39: #{bert_forward.17} parent=0 // pred_check_branch
    %211 = sbr.rel (0) target = $region41
  $region40: #{bert_forward.17} parent=0 // pred_region
    _
  $region41: #{bert_forward.17} parent=0 // pred_fallthru
    _

// kernel: bert_forward.23
$region0: #{bert_forward.23}
  #allocation0 [shape = 'u32[]', space=smem, size = 0x4, offset = 0x4, fixed_abs, tag = 'smem constant byte address 0x4 - core index']
  #allocation1 [shape = 'u32[72,128]{1,0:T(1,128)}', space=vmem, size = 0x9000, scoped, tag = 'internal scratch']
  #allocation2 [shape = 'f32[16,64]{1,0:T(8,128)}', space=vmem, size = 0x2000, scoped, tag = 'scratch operand']
  %s0 = inlined_call_operand.vmem [shape: bf16[16,32], index: 0, kind: input, shape index: {}]
  %s1 = inlined_call_operand.vmem [shape: bf16[32,64], index: 1, kind: input, shape index: {}]
  %s2 = inlined_call_operand.vmem [shape: f32[1,64], index: 2, kind: input, shape index: {}]
  %s3 = inlined_call_operand.hbm [shape: f32[16,64], index: 3, kind: output, shape index: {}]
  %s4 = sld [smem:[#allocation0]]
  $region30: #{bert_forward.23} parent=0
    _
  %s6 = ssub.s32 1, %s4
  %s7 = scalar_select 0, %s6, %s4
  $region1: #{bert_forward.23} parent=0
    #allocation3 [shape = 'u8[8192]{0}', space=vmem, size = 0x2000, scoped, tag = 'output window, operand 0, single buffered']
    #allocation4 [shape = 's32[1]{0}', space=sflag, size = 0x4, scoped, tag = 'scoped memory for bert_forward.23']
    %8 = vsyncpa [#allocation4], 0
    // Predicated region
    $region2: #{bert_forward.23} parent=1 // pred_check
      _
    $region3: #{bert_forward.23} parent=1 // pred_check_branch
      %10 = sbr.rel (0) target = $region5
    $region4: #{bert_forward.23} parent=1 // pred_region
      _
    $region5: #{bert_forward.23} parent=1 // pred_fallthru
      _
    // Predicated region
    $region6: #{bert_forward.23} parent=1 // pred_check
      _
    $region7: #{bert_forward.23} parent=1 // pred_check_branch
      %12 = sbr.rel (0) target = $region9
    $region8: #{bert_forward.23} parent=1 // pred_region
      _
    $region9: #{bert_forward.23} parent=1 // pred_fallthru
      _
    // Predicated region
    $region10: #{bert_forward.23} parent=1 // pred_check
      _
    $region11: #{bert_forward.23} parent=1 // pred_check_branch
      %14 = sbr.rel (0) target = $region13
    $region12: #{bert_forward.23} parent=1 // pred_region
      _
    $region13: #{bert_forward.23} parent=1 // pred_fallthru
      _
    %p16 = scmp.eq.s32.totalorder 0, 0
    // Predicated region
    $region14: #{bert_forward.23} parent=1 // pred_check
      %p17 = pneg %p16
    $region15: #{bert_forward.23} parent=1 // pred_check_branch
      %19 = sbr.rel (%p17) target = $region17
    $region16: #{bert_forward.23} parent=1 // pred_region
      %vm20 = vcmask 523264
      %21 = vst.msk [vmem:[#allocation2] sm:$0xff] %vm20, 0.0
      %22 = vst.msk [vmem:[#allocation2 + $0x8] sm:$0xff] %vm20, 0.0
    $region17: #{bert_forward.23} parent=1 // pred_fallthru
      _
    %v23 = vld [vmem:[#allocation2] sm:$0xff]
    %v24 = vld [vmem:[#allocation2 + $0x8] sm:$0xff]
    %v25 = vld [vmem:[%s0] sm:$0xf]
    %v26 = vld [vmem:[%s0 + $0x4] sm:$0xf]
    %v27 = vld [vmem:[%s1] sm:$0xf]
    %v28 = vld [vmem:[%s1 + $0x4] sm:$0xf]
    %v29 = vld [vmem:[%s1 + $0x8] sm:$0xf]
    %v30 = vld [vmem:[%s1 + $0xc] sm:$0xf]
    %v33 = vunpack.c.l.b16 %v25
    %v34 = vunpack.c.l.b16 %v26
    %v35 = vpack.c.b16 %v34, %v33
    %v40 = vunpack.c.l.b16 %v27
    %v41 = vunpack.c.l.b16 %v28
    %v42 = vunpack.c.l.b16 %v29
    %v43 = vunpack.c.l.b16 %v30
    %v44 = vpack.c.b16 %v41, %v40
    %v45 = vpack.c.b16 %v43, %v42
    %vm48 = vcmask 261120
    %v50 = vsel %vm48, %v35, 0
    %52 = vmatpush.bf16.msra.mxu0 0
    %53 = vmatpush.bf16.msra.mxu0 0
    %54 = vmatpush.bf16.msra.mxu0 0
    %55 = vmatpush.bf16.msra.mxu0 0
    %56 = vmatpush.bf16.msra.mxu0 0
    %57 = vmatpush.bf16.msra.mxu0 0
    %58 = vmatpush.bf16.msra.mxu0 %v45
    %59 = vmatpush.bf16.msra.mxu0 %v44
    %60 = vmatmul.bf16.gmra.mxu0 %v50
    %v61 = vpop.f32.mrf.mxu0
    %v62 = vadd.f32 0.0, %v61
    %v63 = vpop.f32.mrf.mxu0
    %v64 = vadd.f32 0.0, %v63
    %65 = vdwg.mxu0
    %v66 = vadd.f32 %v23, %v62
    %v67 = vadd.f32 %v24, %v64
    %vm68 = vcmask 523264
    %69 = vst.msk [vmem:[#allocation2] sm:$0xff] %vm68, %v66
    %70 = vst.msk [vmem:[#allocation2 + $0x8] sm:$0xff] %vm68, %v67
    // Predicated region
    $region18: #{bert_forward.23} parent=1 // pred_check
      %p71 = pneg %p16
    $region19: #{bert_forward.23} parent=1 // pred_check_branch
      %73 = sbr.rel (%p71) target = $region21
    $region20: #{bert_forward.23} parent=1 // pred_region
      %v74 = vld [vmem:[#allocation2] sm:$0xff]
      %v75 = vld [vmem:[#allocation2 + $0x8] sm:$0xff]
      %v76 = vld [vmem:[%s2] sm:$0x1]
      %v78 = vperm.slane %v76, 0
      %v80 = vadd.f32 %v74, %v78
      %v81 = vadd.f32 %v75, %v78
      %v82 = vsel %vm68, %v80, -inf
      %83 = vmax.xlane.f32.xlu0 %v82
      %v84 = vpop.xlane.xlu0 %83
      %v85 = vsel %vm68, %v81, -inf
      %86 = vmax.xlane.f32.xlu0 %v85
      %v87 = vpop.xlane.xlu0 %86
      %v88 = vsub.f32 %v80, %v84
      %v89 = vsub.f32 %v81, %v87
      %v90 = vmul.f32 %v88, 1.442695
      %v91 = vpow.pop %v90
      %v92 = vmul.f32 %v89, 1.442695
      %v93 = vpow.pop %v92
      %v94 = vsel %vm68, %v91, 0.0
      %95 = vadd.xlane.f32.xlu0 %v94
      %v96 = vpop.xlane.xlu0 %95
      %v97 = vsel %vm68, %v93, 0.0
      %98 = vadd.xlane.f32.xlu0 %v97
      %v99 = vpop.xlane.xlu0 %98
      %v100 = vrcp.pop %v96
      %v101 = vmul.f32 %v96, %v100
      %v102 = vsub.f32 1.0, %v101
      %v103 = vmul.f32 %v100, %v102
      %v104 = vadd.f32 %v100, %v103
      %vm105 = vweird.f32 %v96
      %vm106 = vweird.f32 %v100
      %vm107 = vmor %vm105, %vm106
      %v108 = vsel %vm107, %v100, %v104
      %v109 = vand.u32 2147483647, %v96
      %vm110 = vcmp.eq.f32.partialorder %v109, 8.507059e+37
      %v111 = vand.u32 %v96, 2147483648
      %v112 = vor.u32 1.1754944e-38, %v111
      %v113 = vsel %vm110, %v112, %v108
      %v114 = vmul.f32 %v91, %v113
      %v115 = vrcp.pop %v99
      %v116 = vmul.f32 %v99, %v115
      %v117 = vsub.f32 1.0, %v116
      %v118 = vmul.f32 %v115, %v117
      %v119 = vadd.f32 %v115, %v118
      %vm120 = vweird.f32 %v99
      %vm121 = vweird.f32 %v115
      %vm122 = vmor %vm120, %vm121
      %v123 = vsel %vm122, %v115, %v119
      %v124 = vand.u32 2147483647, %v99
      %vm125 = vcmp.eq.f32.partialorder %v124, 8.507059e+37
      %v126 = vand.u32 %v99, 2147483648
      %v127 = vor.u32 1.1754944e-38, %v126
      %v128 = vsel %vm125, %v127, %v123
      %v129 = vmul.f32 %v93, %v128
      %130 = vst.msk [vmem:[#allocation3] sm:$0xff] %vm68, %v114
      %131 = vst.msk [vmem:[#allocation3 + $0x8] sm:$0xff] %vm68, %v129
    $region21: #{bert_forward.23} parent=1 // pred_fallthru
      _
    // Predicated region
    $region22: #{bert_forward.23} parent=1 // pred_check
      _
    $region23: #{bert_forward.23} parent=1 // pred_check_branch
      %133 = sbr.rel (0) target = $region25
    $region24: #{bert_forward.23} parent=1 // pred_region
      %135 = vsyncadd [#allocation4], 0
      %s136 = sshll.u32 [#allocation3], 4
      %s137 = int_to_ptr.vmem [resolvable:$true] %s136
      %s138 = sshll.u32 %s3, 4
      %s139 = int_to_ptr.hbm [resolvable:$true] %s138
      %144 = dma.vmem_to_hbm [thread:$0]  %s137, 256, %s139, [#allocation4], 128, 128, 8
    $region25: #{bert_forward.23} parent=1 // pred_fallthru
      _
    // Predicated region
    $region26: #{bert_forward.23} parent=1 // pred_check
      _
    $region27: #{bert_forward.23} parent=1 // pred_check_branch
      %146 = sbr.rel (0) target = $region29
    $region28: #{bert_forward.23} parent=1 // pred_region
      %148 = dma.done [#allocation4], 256
    $region29: #{bert_forward.23} parent=1 // pred_fallthru
      _
    %149 = vsyncpa [#allocation4], 1

// kernel: bert_forward.16
$region0: #{bert_forward.16}
  #allocation0 [shape = 'u32[]', space=smem, size = 0x4, offset = 0x4, fixed_abs, tag = 'smem constant byte address 0x4 - core index']
  #allocation1 [shape = 'u32[72,128]{1,0:T(1,128)}', space=vmem, size = 0x9000, scoped, tag = 'internal scratch']
  #allocation2 [shape = 'f32[16,128]{1,0:T(8,128)}', space=vmem, size = 0x2000, scoped, tag = 'scratch operand']
  %s0 = inlined_call_operand.vmem [shape: bf16[16,32], index: 0, kind: input, shape index: {}]
  %s1 = inlined_call_operand.vmem [shape: bf16[32,128], index: 1, kind: input, shape index: {}]
  %s2 = inlined_call_operand.vmem [shape: f32[1,128], index: 2, kind: input, shape index: {}]
  %s3 = inlined_call_operand.vmem [shape: bf16[16,128], index: 3, kind: output, shape index: {}]
  %s4 = sld [smem:[#allocation0]]
  $region30: #{bert_forward.16} parent=0
    _
  %s6 = ssub.s32 1, %s4
  %s7 = scalar_select 0, %s6, %s4
  // Predicated region
  $region2: #{bert_forward.16} parent=0 // pred_check
    _
  $region3: #{bert_forward.16} parent=0 // pred_check_branch
    %9 = sbr.rel (0) target = $region5
  $region4: #{bert_forward.16} parent=0 // pred_region
    _
  $region5: #{bert_forward.16} parent=0 // pred_fallthru
    _
  // Predicated region
  $region6: #{bert_forward.16} parent=0 // pred_check
    _
  $region7: #{bert_forward.16} parent=0 // pred_check_branch
    %11 = sbr.rel (0) target = $region9
  $region8: #{bert_forward.16} parent=0 // pred_region
    _
  $region9: #{bert_forward.16} parent=0 // pred_fallthru
    _
  // Predicated region
  $region10: #{bert_forward.16} parent=0 // pred_check
    _
  $region11: #{bert_forward.16} parent=0 // pred_check_branch
    %13 = sbr.rel (0) target = $region13
  $region12: #{bert_forward.16} parent=0 // pred_region
    _
  $region13: #{bert_forward.16} parent=0 // pred_fallthru
    _
  %p15 = scmp.eq.s32.totalorder 0, 0
  // Predicated region
  $region14: #{bert_forward.16} parent=0 // pred_check
    %p16 = pneg %p15
  $region15: #{bert_forward.16} parent=0 // pred_check_branch
    %18 = sbr.rel (%p16) target = $region17
  $region16: #{bert_forward.16} parent=0 // pred_region
    %19 = vst [vmem:[#allocation2] sm:$0xff] 0.0
    %20 = vst [vmem:[#allocation2 + $0x8] sm:$0xff] 0.0
  $region17: #{bert_forward.16} parent=0 // pred_fallthru
    _
  %v21 = vld [vmem:[#allocation2] sm:$0xff]
  %v22 = vld [vmem:[#allocation2 + $0x8] sm:$0xff]
  %v23 = vld [vmem:[%s0] sm:$0xf]
  %v24 = vld [vmem:[%s0 + $0x4] sm:$0xf]
  %v25 = vld [vmem:[%s1] sm:$0xf]
  %v26 = vld [vmem:[%s1 + $0x4] sm:$0xf]
  %v27 = vld [vmem:[%s1 + $0x8] sm:$0xf]
  %v28 = vld [vmem:[%s1 + $0xc] sm:$0xf]
  %v31 = vunpack.c.l.b16 %v23
  %v32 = vunpack.c.l.b16 %v24
  %v33 = vpack.c.b16 %v32, %v31
  %v38 = vunpack.c.l.b16 %v25
  %v39 = vunpack.c.l.b16 %v26
  %v40 = vunpack.c.l.b16 %v27
  %v41 = vunpack.c.l.b16 %v28
  %v42 = vpack.c.b16 %v39, %v38
  %v43 = vpack.c.b16 %v41, %v40
  %vm46 = vcmask 261120
  %v48 = vsel %vm46, %v33, 0
  %50 = vmatpush.bf16.msra.mxu0 0
  %51 = vmatpush.bf16.msra.mxu0 0
  %52 = vmatpush.bf16.msra.mxu0 0
  %53 = vmatpush.bf16.msra.mxu0 0
  %54 = vmatpush.bf16.msra.mxu0 0
  %55 = vmatpush.bf16.msra.mxu0 0
  %56 = vmatpush.bf16.msra.mxu0 %v43
  %57 = vmatpush.bf16.msra.mxu0 %v42
  %58 = vmatmul.bf16.gmra.mxu0 %v48
  %v59 = vpop.f32.mrf.mxu0
  %v60 = vadd.f32 0.0, %v59
  %v61 = vpop.f32.mrf.mxu0
  %v62 = vadd.f32 0.0, %v61
  %63 = vdwg.mxu0
  %v64 = vadd.f32 %v21, %v60
  %v65 = vadd.f32 %v22, %v62
  %66 = vst [vmem:[#allocation2] sm:$0xff] %v64
  %67 = vst [vmem:[#allocation2 + $0x8] sm:$0xff] %v65
  // Predicated region
  $region18: #{bert_forward.16} parent=0 // pred_check
    %p68 = pneg %p15
  $region19: #{bert_forward.16} parent=0 // pred_check_branch
    %70 = sbr.rel (%p68) target = $region21
  $region20: #{bert_forward.16} parent=0 // pred_region
    %v71 = vld [vmem:[#allocation2] sm:$0xff]
    %v72 = vld [vmem:[#allocation2 + $0x8] sm:$0xff]
    %v73 = vld [vmem:[%s2] sm:$0x1]
    %v75 = vperm.slane %v73, 0
    %v77 = vadd.f32 %v71, %v75
    %v78 = vadd.f32 %v72, %v75
    %v79 = vmul.f32 %v77, 0.5
    %v80 = vmul.f32 %v78, 0.5
    %v81 = vmul.f32 %v77, 0.70710677
    %v82 = vmul.f32 %v78, 0.70710677
    %v83 = vmul.f32 %v81, %v81
    %v84 = vmin.f32 16.0, %v83
    %v85 = vmul.f32 %v84, 2.1237322e-06
    %v86 = vadd.f32 %v85, 0.00028619796
    %v87 = vmul.f32 %v84, %v86
    %v88 = vadd.f32 %v87, 0.0036580483
    %v89 = vmul.f32 %v84, %v88
    %v90 = vadd.f32 %v89, 0.05243302
    %v91 = vmul.f32 %v84, %v90
    %v92 = vadd.f32 %v91, 0.18741608
    %v93 = vmul.f32 %v84, %v92
    %v94 = vadd.f32 %v93, 1.1283791
    %v95 = vmul.f32 %v81, %v94
    %v96 = vmul.f32 %v84, 3.8918573e-05
    %v97 = vadd.f32 %v96, 0.001143296
    %v98 = vmul.f32 %v84, %v97
    %v99 = vadd.f32 %v98, 0.014752088
    %v100 = vmul.f32 %v84, %v99
    %v101 = vadd.f32 %v100, 0.112945676
    %v102 = vmul.f32 %v84, %v101
    %v103 = vadd.f32 %v102, 0.4994258
    %v104 = vmul.f32 %v84, %v103
    %v105 = vadd.f32 %v104, 1.0
    %v106 = vrcp.pop %v105
    %v107 = vmul.f32 %v105, %v106
    %v108 = vsub.f32 1.0, %v107
    %v109 = vmul.f32 %v106, %v108
    %v110 = vadd.f32 %v106, %v109
    %vm111 = vweird.f32 %v105
    %vm112 = vweird.f32 %v106
    %vm113 = vmor %vm111, %vm112
    %v114 = vsel %vm113, %v106, %v110
    %v115 = vand.u32 2147483647, %v105
    %vm116 = vcmp.eq.f32.partialorder %v115, 8.507059e+37
    %v117 = vand.u32 %v105, 2147483648
    %v118 = vor.u32 1.1754944e-38, %v117
    %v119 = vsel %vm116, %v118, %v114
    %v120 = vmul.f32 %v95, %v119
    %v121 = vmin.f32 %v120, 1.0
    %v122 = vmax.f32 %v121, -1.0
    %v123 = vmul.f32 %v82, %v82
    %v124 = vmin.f32 16.0, %v123
    %v125 = vmul.f32 %v124, 2.1237322e-06
    %v126 = vadd.f32 %v125, 0.00028619796
    %v127 = vmul.f32 %v124, %v126
    %v128 = vadd.f32 %v127, 0.0036580483
    %v129 = vmul.f32 %v124, %v128
    %v130 = vadd.f32 %v129, 0.05243302
    %v131 = vmul.f32 %v124, %v130
    %v132 = vadd.f32 %v131, 0.18741608
    %v133 = vmul.f32 %v124, %v132
    %v134 = vadd.f32 %v133, 1.1283791
    %v135 = vmul.f32 %v82, %v134
    %v136 = vmul.f32 %v124, 3.8918573e-05
    %v137 = vadd.f32 %v136, 0.001143296
    %v138 = vmul.f32 %v124, %v137
    %v139 = vadd.f32 %v138, 0.014752088
    %v140 = vmul.f32 %v124, %v139
    %v141 = vadd.f32 %v140, 0.112945676
    %v142 = vmul.f32 %v124, %v141
    %v143 = vadd.f32 %v142, 0.4994258
    %v144 = vmul.f32 %v124, %v143
    %v145 = vadd.f32 %v144, 1.0
    %v146 = vrcp.pop %v145
    %v147 = vmul.f32 %v145, %v146
    %v148 = vsub.f32 1.0, %v147
    %v149 = vmul.f32 %v146, %v148
    %v150 = vadd.f32 %v146, %v149
    %vm151 = vweird.f32 %v145
    %vm152 = vweird.f32 %v146
    %vm153 = vmor %vm151, %vm152
    %v154 = vsel %vm153, %v146, %v150
    %v155 = vand.u32 2147483647, %v145
    %vm156 = vcmp.eq.f32.partialorder %v155, 8.507059e+37
    %v157 = vand.u32 %v145, 2147483648
    %v158 = vor.u32 1.1754944e-38, %v157
    %v159 = vsel %vm156, %v158, %v154
    %v160 = vmul.f32 %v135, %v159
    %v161 = vmin.f32 %v160, 1.0
    %v162 = vmax.f32 %v161, -1.0
    %v163 = vadd.f32 %v122, 1.0
    %v164 = vadd.f32 %v162, 1.0
    %v165 = vmul.f32 %v79, %v163
    %v166 = vmul.f32 %v80, %v164
    %v167 = vpack.c.bf16 %v165, %v165
    %v168 = vpack.c.bf16 %v166, %v166
    %169 = vst [vmem:[%s3] sm:$0xf] %v167
    %170 = vst [vmem:[%s3 + $0x4] sm:$0xf] %v168
  $region21: #{bert_forward.16} parent=0 // pred_fallthru
    _
  // Predicated region
  $region22: #{bert_forward.16} parent=0 // pred_check
    _
  $region23: #{bert_forward.16} parent=0 // pred_check_branch
    %172 = sbr.rel (0) target = $region25
  $region24: #{bert_forward.16} parent=0 // pred_region
    _
  $region25: #{bert_forward.16} parent=0 // pred_fallthru
    _
  // Predicated region
  $region26: #{bert_forward.16} parent=0 // pred_check
    _
  $region27: #{bert_forward.16} parent=0 // pred_check_branch
    %174 = sbr.rel (0) target = $region29
  $region28: #{bert_forward.16} parent=0 // pred_region
    _
  $region29: #{bert_forward.16} parent=0 // pred_fallthru
    _

</llo_original>
